<compile_context>
chip_gen: v7x
topology: tpu7x:2x2x1
jax: 0.10.0
libtpu: 0.0.40
codegen_flags: <defaults>
</compile_context>

<pallas_src>
import functools

import jax
import jax.numpy as jnp
from jax.experimental import pallas as pl
from jax.experimental.pallas import tpu as pltpu

WEIGHT_BW = 8      # weight_bw
ACT_BW = 8         # activation_bw
_W_QMAX = float((1 << WEIGHT_BW) - 1)
_A_QMAX = float((1 << ACT_BW) - 1)
# is_symmetric=False -> asymmetric (min/max, zero included) fake quant-dequant.


def _round_up(v, m):
    return -(-v // m) * m


def _asym_encoding(x, qmax):
    """Per-tensor asymmetric (post_training_tf min/max) scale & offset."""
    mn = jnp.minimum(jnp.min(x), 0.0)          # encoding min always <= 0
    mx = jnp.maximum(jnp.max(x), 0.0)          # encoding max always >= 0
    scale = (mx - mn) / qmax
    scale = jnp.where(scale == 0.0, 1.0, scale)
    offset = jnp.round(mn / scale)             # (negative) zero-point offset
    return scale, offset


# --------------------------------------------------------------------------- #
# Kernel 0: parameter quantizers (weight -> bf16 codes + scale, bias -> QDQ).  #
# --------------------------------------------------------------------------- #
def _param_qdq_kernel(w_ref, b_ref, wq_ref, ws_ref, bq_ref):
    # Zero padding (K/O pad entries) cannot change the encodings because the
    # asymmetric min/max is clamped to include 0.
    w = w_ref[...]
    w_scale, w_off = _asym_encoding(w, _W_QMAX)
    # codes = q + offset lie in [-qmax, qmax] = [-255, 255]: exactly
    # representable in bf16, so the MXU RHS carries no dequant rounding error
    # (the scale is applied after the dot in the GEMM kernel).
    codes = jnp.clip(jnp.round(w / w_scale) - w_off, 0.0, _W_QMAX) + w_off
    wq_ref[...] = codes.astype(jnp.bfloat16)
    ws_ref[...] = jnp.full((1, 1), w_scale, jnp.float32)

    b = b_ref[...]
    b_scale, b_off = _asym_encoding(b, _W_QMAX)
    bq = jnp.clip(jnp.round(b / b_scale) - b_off, 0.0, _W_QMAX) + b_off
    bq_ref[...] = bq * b_scale


# --------------------------------------------------------------------------- #
# Kernel 1: conv-as-GEMM over M tiles (bf16 MXU) + per-tile masked min/max.    #
# --------------------------------------------------------------------------- #
def _conv_gemm_kernel(x_ref, wq_ref, ws_ref, b_ref, y_ref, mm_ref, *,
                      m_real, tile_m):
    i = pl.program_id(0)
    # Input quantizer: enabled_by_default=False -> passthrough (the bf16 cast of
    # the activations is an accepted tolerance for bf16-native MXU throughput).
    y = jnp.dot(x_ref[...], wq_ref[...], preferred_element_type=jnp.float32)
    y = y * ws_ref[...] + b_ref[...]          # weight scale + QDQ'd bias
    y_ref[...] = y

    # Per-tile min/max for the per-tensor output quantizer.  Padded M rows
    # (bias-only rows) are masked out so they cannot contaminate the encodings;
    # padded O columns are exactly 0 and cannot move a min/max that is later
    # clamped to include 0.
    rows = jax.lax.broadcasted_iota(jnp.int32, y.shape, 0) + i * tile_m
    valid = rows < m_real
    t_min = jnp.min(jnp.where(valid, y, jnp.inf))
    t_max = jnp.max(jnp.where(valid, y, -jnp.inf))
    sel = jax.lax.broadcasted_iota(jnp.int32, (1, 2, 128), 1)
    mm_ref[...] = jnp.where(sel == 0, t_min, t_max)


# --------------------------------------------------------------------------- #
# Kernel 2: per-tensor output QDQ with globally reduced min/max.               #
# --------------------------------------------------------------------------- #
def _output_qdq_kernel(y_ref, mm_ref, o_ref, *, o_real):
    mm = mm_ref[...]                                  # (num_tiles, 2, 128)
    g_min = jnp.minimum(jnp.min(mm[:, 0, :]), 0.0)
    g_max = jnp.maximum(jnp.max(mm[:, 1, :]), 0.0)
    scale = (g_max - g_min) / _A_QMAX
    scale = jnp.where(scale == 0.0, 1.0, scale)
    inv_scale = 1.0 / scale                           # one scalar reciprocal
    offset = jnp.round(g_min * inv_scale)
    y = y_ref[...][:, :o_real]                        # drop padded O columns
    # TODO(synk): jnp.round is round-half-to-even; AIMET's 'nearest' rounding
    # may differ at exact .5 code boundaries.
    q = jnp.clip(jnp.round(y * inv_scale) - offset, 0.0, _A_QMAX)
    o_ref[...] = (q + offset) * scale


@functools.partial(jax.jit, static_argnames=("kh", "kw"))
def lazy_quantize_wrapper_conv2d(x_nchw, w_ochw, bias, *, kh=3, kw=3):
    """Realized LazyQuantizeWrapper(Conv2d, padding=SAME, stride=1) forward.

    x_nchw: [N, C, H, W] float32   (PyTorch NCHW layout)
    w_ochw: [O, C, kh, kw] float32
    bias:   [O] float32
    returns [N, O, H, W] float32
    """
    N, C, H, W = x_nchw.shape
    O = w_ochw.shape[0]
    K = C * kh * kw
    M = N * H * W

    # ---- glue: im2col (SAME padding, stride 1), plain JAX ------------------
    # Built directly in (N, H, W, C, kh*kw) order so no big 5-D transpose of
    # the kh*kw-amplified patches tensor is needed.
    ph, pw = kh // 2, kw // 2
    x_nhwc = jnp.transpose(x_nchw, (0, 2, 3, 1))
    xp = jnp.pad(x_nhwc, ((0, 0), (ph, ph), (pw, pw), (0, 0)))
    slices = [xp[:, i:i + H, j:j + W, :] for i in range(kh) for j in range(kw)]
    patches = jnp.stack(slices, axis=-1).reshape(M, K)   # K index = c*kh*kw + i*kw + j

    # Pad lane/contraction dims to 128 (zeros are inert for the GEMM and for
    # the asymmetric min/max encodings).
    Kp = _round_up(max(K, 128), 128)
    Op = _round_up(max(O, 128), 128)

    # ---- M tile size: fit (double-buffered) tiles + resident weight in the
    # v5e 16 MiB default scoped VMEM; 256-aligned tiles for v6e/v7x MXU. ------
    per_row_bytes = 2 * Kp + 8 * Op          # bf16 patches + f32 raw y + f32 out
    resident = Kp * Op * 2 + Op * 4 + 4096
    budget = 12 * 1024 * 1024
    max_rows = max(8, (budget - 2 * resident) // (2 * per_row_bytes))
    tile_m = min(1024, max_rows, _round_up(M, 256))
    tile_m = (tile_m // 256) * 256 if tile_m >= 256 else (tile_m // 8) * 8
    tile_m = max(8, tile_m)
    Mp = _round_up(M, tile_m)
    num_tiles = Mp // tile_m

    patches_p = jnp.pad(patches, ((0, Mp - M), (0, Kp - K))).astype(jnp.bfloat16)
    w_p = jnp.pad(w_ochw.reshape(O, K).T, ((0, Kp - K), (0, Op - O)))
    b_p = jnp.pad(bias.reshape(1, O), ((0, 0), (0, Op - O)))

    # ---- kernel 0: parameter QDQ (runs once, whole weight fits VMEM) -------
    wq, ws, bq = pl.pallas_call(
        _param_qdq_kernel,
        out_shape=(jax.ShapeDtypeStruct((Kp, Op), jnp.bfloat16),
                   jax.ShapeDtypeStruct((1, 1), jnp.float32),
                   jax.ShapeDtypeStruct((1, Op), jnp.float32)),
        in_specs=[pl.BlockSpec(memory_space=pltpu.MemorySpace.VMEM),
                  pl.BlockSpec(memory_space=pltpu.MemorySpace.VMEM)],
        out_specs=(pl.BlockSpec(memory_space=pltpu.MemorySpace.VMEM),
                   pl.BlockSpec(memory_space=pltpu.MemorySpace.VMEM),
                   pl.BlockSpec(memory_space=pltpu.MemorySpace.VMEM)),
    )(w_p, b_p)

    # ---- kernel 1: M-tiled bf16 GEMM + per-tile output min/max -------------
    conv_kernel = functools.partial(_conv_gemm_kernel, m_real=M, tile_m=tile_m)
    y_raw, mm = pl.pallas_call(
        conv_kernel,
        grid=(num_tiles,),
        out_shape=(jax.ShapeDtypeStruct((Mp, Op), jnp.float32),
                   jax.ShapeDtypeStruct((num_tiles, 2, 128), jnp.float32)),
        in_specs=[
            pl.BlockSpec((tile_m, Kp), lambda i: (i, 0)),   # patches tile
            pl.BlockSpec((Kp, Op), lambda i: (0, 0)),       # weight codes (resident)
            pl.BlockSpec((1, 1), lambda i: (0, 0)),         # weight scale (resident)
            pl.BlockSpec((1, Op), lambda i: (0, 0)),        # QDQ'd bias (resident)
        ],
        out_specs=(
            pl.BlockSpec((tile_m, Op), lambda i: (i, 0)),
            pl.BlockSpec((1, 2, 128), lambda i: (i, 0, 0)),
        ),
        compiler_params=pltpu.CompilerParams(dimension_semantics=("parallel",)),
    )(patches_p, wq, ws, bq)

    # ---- kernel 2: per-tensor output QDQ, narrow-O writeback ---------------
    out_kernel = functools.partial(_output_qdq_kernel, o_real=O)
    out_mo = pl.pallas_call(
        out_kernel,
        grid=(num_tiles,),
        out_shape=jax.ShapeDtypeStruct((Mp, O), jnp.float32),
        in_specs=[
            pl.BlockSpec((tile_m, Op), lambda i: (i, 0)),
            pl.BlockSpec((num_tiles, 2, 128), lambda i: (0, 0, 0)),
        ],
        out_specs=pl.BlockSpec((tile_m, O), lambda i: (i, 0)),
        compiler_params=pltpu.CompilerParams(dimension_semantics=("parallel",)),
    )(y_raw, mm)

    # ---- glue: un-pad rows, back to NCHW ------------------------------------
    y = out_mo[:M].reshape(N, H, W, O).transpose(0, 3, 1, 2)
    return y


if __name__ == "__main__":
    key = jax.random.PRNGKey(0)
    kx, kw_, kb = jax.random.split(key, 3)

    N, C, H, W = 2, 4, 16, 16
    O, KH, KW = 8, 3, 3

    x = jax.random.normal(kx, (N, C, H, W), dtype=jnp.float32)
    w = jax.random.normal(kw_, (O, C, KH, KW), dtype=jnp.float32) * 0.1
    b = jax.random.normal(kb, (O,), dtype=jnp.float32) * 0.1

    out = lazy_quantize_wrapper_conv2d(x, w, b, kh=KH, kw=KW)
    out = jax.block_until_ready(out)

    assert out.shape == (N, O, H, W), out.shape
    assert bool(jnp.all(jnp.isfinite(out)))
    print("KERNEL_OK")
</pallas_src>

<mosaic_0001>
module attributes {stable_mosaic.version = 11 : i64} {
  func.func @_param_qdq_kernel(%arg0: memref<128x128xf32, #tpu.memory_space<vmem>>, %arg1: memref<1x128xf32, #tpu.memory_space<vmem>>, %arg2: memref<128x128xbf16, #tpu.memory_space<vmem>>, %arg3: memref<1x1xf32, #tpu.memory_space<vmem>>, %arg4: memref<1x128xf32, #tpu.memory_space<vmem>>) attributes {dimension_semantics = [], scalar_prefetch = 0 : i64, scratch_operands = 0 : i64, tpu.core_type = #tpu.core_type<tc>} {
    %c0 = arith.constant 0 : index
    %c0_0 = arith.constant 0 : index
    %0 = vector.load %arg0[%c0, %c0_0] : memref<128x128xf32, #tpu.memory_space<vmem>>, vector<128x128xf32>
    %1 = vector.shape_cast %0 : vector<128x128xf32> to vector<1x128x128xf32>
    %cst = arith.constant dense<0x7F800000> : vector<1xf32>
    %2 = vector.multi_reduction <minimumf>, %1, %cst [1, 2] : vector<1x128x128xf32> to vector<1xf32>
    %3 = vector.shape_cast %2 : vector<1xf32> to vector<1x1x1xf32>
    %4 = vector.extract %3[0, 0, 0] : f32 from vector<1x1x1xf32>
    %cst_1 = arith.constant 0.000000e+00 : f32
    %5 = arith.minimumf %4, %cst_1 : f32
    %6 = vector.shape_cast %0 : vector<128x128xf32> to vector<1x128x128xf32>
    %cst_2 = arith.constant dense<0xFF800000> : vector<1xf32>
    %7 = vector.multi_reduction <maximumf>, %6, %cst_2 [1, 2] : vector<1x128x128xf32> to vector<1xf32>
    %8 = vector.shape_cast %7 : vector<1xf32> to vector<1x1x1xf32>
    %9 = vector.extract %8[0, 0, 0] : f32 from vector<1x1x1xf32>
    %cst_3 = arith.constant 0.000000e+00 : f32
    %10 = arith.maximumf %9, %cst_3 : f32
    %11 = arith.subf %10, %5 : f32
    %cst_4 = arith.constant 2.550000e+02 : f32
    %12 = arith.divf %11, %cst_4 : f32
    %cst_5 = arith.constant 0.000000e+00 : f32
    %13 = arith.cmpf oeq, %12, %cst_5 : f32
    %cst_6 = arith.constant 1.000000e+00 : f32
    %14 = arith.select %13, %cst_6, %12 : f32
    %15 = arith.divf %5, %14 : f32
    %16 = math.roundeven %15 : f32
    %17 = vector.broadcast %14 : f32 to vector<128x128xf32>
    %18 = arith.divf %0, %17 : vector<128x128xf32>
    %19 = math.roundeven %18 : vector<128x128xf32>
    %20 = vector.broadcast %16 : f32 to vector<128x128xf32>
    %21 = arith.subf %19, %20 : vector<128x128xf32>
    %cst_7 = arith.constant 0.000000e+00 : f32
    %cst_8 = arith.constant 2.550000e+02 : f32
    %22 = vector.broadcast %cst_7 : f32 to vector<128x128xf32>
    %23 = arith.maximumf %22, %21 : vector<128x128xf32>
    %24 = vector.broadcast %cst_8 : f32 to vector<128x128xf32>
    %25 = arith.minimumf %24, %23 : vector<128x128xf32>
    %26 = vector.broadcast %16 : f32 to vector<128x128xf32>
    %27 = arith.addf %25, %26 : vector<128x128xf32>
    %28 = arith.truncf %27 : vector<128x128xf32> to vector<128x128xbf16>
    %c0_9 = arith.constant 0 : index
    %c0_10 = arith.constant 0 : index
    %29 = vector.load %arg2[%c0_9, %c0_10] : memref<128x128xbf16, #tpu.memory_space<vmem>>, vector<128x128xbf16>
    tpu.vector_store %arg2[%c0_9, %c0_10], %28 {strides = array<i32>} : memref<128x128xbf16, #tpu.memory_space<vmem>>, vector<128x128xbf16>,
    %30 = vector.broadcast %14 : f32 to vector<1x1xf32>
    %c0_11 = arith.constant 0 : index
    %c0_12 = arith.constant 0 : index
    %31 = vector.load %arg3[%c0_11, %c0_12] : memref<1x1xf32, #tpu.memory_space<vmem>>, vector<1x1xf32>
    tpu.vector_store %arg3[%c0_11, %c0_12], %30 {strides = array<i32>} : memref<1x1xf32, #tpu.memory_space<vmem>>, vector<1x1xf32>,
    %c0_13 = arith.constant 0 : index
    %c0_14 = arith.constant 0 : index
    %32 = vector.load %arg1[%c0_13, %c0_14] : memref<1x128xf32, #tpu.memory_space<vmem>>, vector<1x128xf32>
    %33 = vector.shape_cast %32 : vector<1x128xf32> to vector<1x1x128xf32>
    %cst_15 = arith.constant dense<0x7F800000> : vector<1xf32>
    %34 = vector.multi_reduction <minimumf>, %33, %cst_15 [1, 2] : vector<1x1x128xf32> to vector<1xf32>
    %35 = vector.shape_cast %34 : vector<1xf32> to vector<1x1x1xf32>
    %36 = vector.extract %35[0, 0, 0] : f32 from vector<1x1x1xf32>
    %cst_16 = arith.constant 0.000000e+00 : f32
    %37 = arith.minimumf %36, %cst_16 : f32
    %38 = vector.shape_cast %32 : vector<1x128xf32> to vector<1x1x128xf32>
    %cst_17 = arith.constant dense<0xFF800000> : vector<1xf32>
    %39 = vector.multi_reduction <maximumf>, %38, %cst_17 [1, 2] : vector<1x1x128xf32> to vector<1xf32>
    %40 = vector.shape_cast %39 : vector<1xf32> to vector<1x1x1xf32>
    %41 = vector.extract %40[0, 0, 0] : f32 from vector<1x1x1xf32>
    %cst_18 = arith.constant 0.000000e+00 : f32
    %42 = arith.maximumf %41, %cst_18 : f32
    %43 = arith.subf %42, %37 : f32
    %cst_19 = arith.constant 2.550000e+02 : f32
    %44 = arith.divf %43, %cst_19 : f32
    %cst_20 = arith.constant 0.000000e+00 : f32
    %45 = arith.cmpf oeq, %44, %cst_20 : f32
    %cst_21 = arith.constant 1.000000e+00 : f32
    %46 = arith.select %45, %cst_21, %44 : f32
    %47 = arith.divf %37, %46 : f32
    %48 = math.roundeven %47 : f32
    %49 = vector.broadcast %46 : f32 to vector<1x128xf32>
    %50 = arith.divf %32, %49 : vector<1x128xf32>
    %51 = math.roundeven %50 : vector<1x128xf32>
    %52 = vector.broadcast %48 : f32 to vector<1x128xf32>
    %53 = arith.subf %51, %52 : vector<1x128xf32>
    %cst_22 = arith.constant 0.000000e+00 : f32
    %cst_23 = arith.constant 2.550000e+02 : f32
    %54 = vector.broadcast %cst_22 : f32 to vector<1x128xf32>
    %55 = arith.maximumf %54, %53 : vector<1x128xf32>
    %56 = vector.broadcast %cst_23 : f32 to vector<1x128xf32>
    %57 = arith.minimumf %56, %55 : vector<1x128xf32>
    %58 = vector.broadcast %48 : f32 to vector<1x128xf32>
    %59 = arith.addf %57, %58 : vector<1x128xf32>
    %60 = vector.broadcast %46 : f32 to vector<1x128xf32>
    %61 = arith.mulf %59, %60 : vector<1x128xf32>
    %c0_24 = arith.constant 0 : index
    %c0_25 = arith.constant 0 : index
    %62 = vector.load %arg4[%c0_24, %c0_25] : memref<1x128xf32, #tpu.memory_space<vmem>>, vector<1x128xf32>
    tpu.vector_store %arg4[%c0_24, %c0_25], %61 {strides = array<i32>} : memref<1x128xf32, #tpu.memory_space<vmem>>, vector<1x128xf32>,
    return
  }
}

module attributes {stable_mosaic.version = 11 : i64} {
  func.func @_conv_gemm_kernel(%arg0: i32, %arg1: memref<512x128xbf16, #tpu.memory_space<vmem>>, %arg2: memref<128x128xbf16, #tpu.memory_space<vmem>>, %arg3: memref<1x1xf32, #tpu.memory_space<vmem>>, %arg4: memref<1x128xf32, #tpu.memory_space<vmem>>, %arg5: memref<512x128xf32, #tpu.memory_space<vmem>>, %arg6: memref<1x2x128xf32, #tpu.memory_space<vmem>>) attributes {dimension_semantics = [#tpu.dimension_semantics<parallel>], iteration_bounds = array<i64: 1>, scalar_prefetch = 0 : i64, scratch_operands = 0 : i64, tpu.core_type = #tpu.core_type<tc>, window_params = [{transform_indices = @transform_0, window_bounds = array<i64: 512, 128>}, {pipeline_mode = #tpu.pipeline_mode<synchronous>, transform_indices = @transform_1, window_bounds = array<i64: 128, 128>}, {pipeline_mode = #tpu.pipeline_mode<synchronous>, transform_indices = @transform_2, window_bounds = array<i64: 1, 1>}, {pipeline_mode = #tpu.pipeline_mode<synchronous>, transform_indices = @transform_3, window_bounds = array<i64: 1, 128>}, {transform_indices = @transform_4, window_bounds = array<i64: 512, 128>}, {transform_indices = @transform_5, window_bounds = array<i64: 1, 2, 128>}]} {
    %c0 = arith.constant 0 : index
    %c0_0 = arith.constant 0 : index
    %0 = vector.load %arg1[%c0, %c0_0] : memref<512x128xbf16, #tpu.memory_space<vmem>>, vector<512x128xbf16>
    %c0_1 = arith.constant 0 : index
    %c0_2 = arith.constant 0 : index
    %1 = vector.load %arg2[%c0_1, %c0_2] : memref<128x128xbf16, #tpu.memory_space<vmem>>, vector<128x128xbf16>
    %cst = arith.constant dense<0.000000e+00> : vector<512x128xf32>
    %2 = tpu.matmul %0, %1, %cst {dimension_numbers = #tpu.dot_dimension_numbers<[1], [0], [0], [1], [0, 0, 1, 1], [], []>} : vector<512x128xbf16>, vector<128x128xbf16>, vector<512x128xf32> -> vector<512x128xf32>
    %c0_3 = arith.constant 0 : index
    %c0_4 = arith.constant 0 : index
    %3 = vector.load %arg3[%c0_3, %c0_4] : memref<1x1xf32, #tpu.memory_space<vmem>>, vector<1x1xf32>
    %4 = vector.broadcast %3 : vector<1x1xf32> to vector<512x128xf32>
    %5 = arith.mulf %2, %4 : vector<512x128xf32>
    %c0_5 = arith.constant 0 : index
    %c0_6 = arith.constant 0 : index
    %6 = vector.load %arg4[%c0_5, %c0_6] : memref<1x128xf32, #tpu.memory_space<vmem>>, vector<1x128xf32>
    %7 = vector.broadcast %6 : vector<1x128xf32> to vector<512x128xf32>
    %8 = arith.addf %5, %7 : vector<512x128xf32>
    %c0_7 = arith.constant 0 : index
    %c0_8 = arith.constant 0 : index
    %9 = vector.load %arg5[%c0_7, %c0_8] : memref<512x128xf32, #tpu.memory_space<vmem>>, vector<512x128xf32>
    tpu.vector_store %arg5[%c0_7, %c0_8], %8 {strides = array<i32>} : memref<512x128xf32, #tpu.memory_space<vmem>>, vector<512x128xf32>,
    %10 = tpu.iota {dimensions = array<i32: 0>} : vector<512x128xi32>
    %c512_i32 = arith.constant 512 : i32
    %11 = arith.muli %arg0, %c512_i32 : i32
    %12 = vector.broadcast %11 : i32 to vector<512x128xi32>
    %13 = arith.addi %10, %12 : vector<512x128xi32>
    %c512_i32_9 = arith.constant 512 : i32
    %14 = vector.broadcast %c512_i32_9 : i32 to vector<512x128xi32>
    %15 = arith.cmpi slt, %13, %14 : vector<512x128xi32>
    %cst_10 = arith.constant 0x7F800000 : f32
    %16 = vector.broadcast %cst_10 : f32 to vector<512x128xf32>
    %17 = arith.select %15, %8, %16 : vector<512x128xi1>, vector<512x128xf32>
    %18 = vector.shape_cast %17 : vector<512x128xf32> to vector<1x512x128xf32>
    %cst_11 = arith.constant dense<0x7F800000> : vector<1xf32>
    %19 = vector.multi_reduction <minimumf>, %18, %cst_11 [1, 2] : vector<1x512x128xf32> to vector<1xf32>
    %20 = vector.shape_cast %19 : vector<1xf32> to vector<1x1x1xf32>
    %21 = vector.extract %20[0, 0, 0] : f32 from vector<1x1x1xf32>
    %cst_12 = arith.constant 0xFF800000 : f32
    %22 = vector.broadcast %cst_12 : f32 to vector<512x128xf32>
    %23 = arith.select %15, %8, %22 : vector<512x128xi1>, vector<512x128xf32>
    %24 = vector.shape_cast %23 : vector<512x128xf32> to vector<1x512x128xf32>
    %cst_13 = arith.constant dense<0xFF800000> : vector<1xf32>
    %25 = vector.multi_reduction <maximumf>, %24, %cst_13 [1, 2] : vector<1x512x128xf32> to vector<1xf32>
    %26 = vector.shape_cast %25 : vector<1xf32> to vector<1x1x1xf32>
    %27 = vector.extract %26[0, 0, 0] : f32 from vector<1x1x1xf32>
    %28 = tpu.iota {dimensions = array<i32: 1>} : vector<1x2x128xi32>
    %c0_i32 = arith.constant 0 : i32
    %29 = vector.broadcast %c0_i32 : i32 to vector<1x2x128xi32>
    %30 = arith.cmpi eq, %28, %29 : vector<1x2x128xi32>
    %31 = vector.broadcast %21 : f32 to vector<1x2x128xf32>
    %32 = vector.broadcast %27 : f32 to vector<1x2x128xf32>
    %33 = arith.select %30, %31, %32 : vector<1x2x128xi1>, vector<1x2x128xf32>
    %c0_14 = arith.constant 0 : index
    %c0_15 = arith.constant 0 : index
    %c0_16 = arith.constant 0 : index
    %34 = vector.load %arg6[%c0_14, %c0_15, %c0_16] : memref<1x2x128xf32, #tpu.memory_space<vmem>>, vector<1x2x128xf32>
    tpu.vector_store %arg6[%c0_14, %c0_15, %c0_16], %33 {strides = array<i32>} : memref<1x2x128xf32, #tpu.memory_space<vmem>>, vector<1x2x128xf32>,
    return
  }
  func.func @transform_0(%arg0: i32) -> (i32, i32) {
    %c0_i32 = arith.constant 0 : i32
    %c0_i32_0 = arith.constant 0 : i32
    return %arg0, %c0_i32 : i32, i32
  }
  func.func @transform_1(%arg0: i32) -> (i32, i32) {
    %c0_i32 = arith.constant 0 : i32
    %c0_i32_0 = arith.constant 0 : i32
    %c0_i32_1 = arith.constant 0 : i32
    return %c0_i32, %c0_i32_0 : i32, i32
  }
  func.func @transform_2(%arg0: i32) -> (i32, i32) {
    %c0_i32 = arith.constant 0 : i32
    %c0_i32_0 = arith.constant 0 : i32
    %c0_i32_1 = arith.constant 0 : i32
    return %c0_i32, %c0_i32_0 : i32, i32
  }
  func.func @transform_3(%arg0: i32) -> (i32, i32) {
    %c0_i32 = arith.constant 0 : i32
    %c0_i32_0 = arith.constant 0 : i32
    %c0_i32_1 = arith.constant 0 : i32
    return %c0_i32, %c0_i32_0 : i32, i32
  }
  func.func @transform_4(%arg0: i32) -> (i32, i32) {
    %c0_i32 = arith.constant 0 : i32
    %c0_i32_0 = arith.constant 0 : i32
    return %arg0, %c0_i32 : i32, i32
  }
  func.func @transform_5(%arg0: i32) -> (i32, i32, i32) {
    %c0_i32 = arith.constant 0 : i32
    %c0_i32_0 = arith.constant 0 : i32
    %c0_i32_1 = arith.constant 0 : i32
    return %arg0, %c0_i32, %c0_i32_0 : i32, i32, i32
  }
}

module attributes {stable_mosaic.version = 11 : i64} {
  func.func @_output_qdq_kernel(%arg0: i32, %arg1: memref<512x128xf32, #tpu.memory_space<vmem>>, %arg2: memref<1x2x128xf32, #tpu.memory_space<vmem>>, %arg3: memref<512x8xf32, #tpu.memory_space<vmem>>) attributes {dimension_semantics = [#tpu.dimension_semantics<parallel>], iteration_bounds = array<i64: 1>, scalar_prefetch = 0 : i64, scratch_operands = 0 : i64, tpu.core_type = #tpu.core_type<tc>, window_params = [{transform_indices = @transform_0, window_bounds = array<i64: 512, 128>}, {pipeline_mode = #tpu.pipeline_mode<synchronous>, transform_indices = @transform_1, window_bounds = array<i64: 1, 2, 128>}, {transform_indices = @transform_2, window_bounds = array<i64: 512, 8>}]} {
    %c0 = arith.constant 0 : index
    %c0_0 = arith.constant 0 : index
    %c0_1 = arith.constant 0 : index
    %0 = vector.load %arg2[%c0, %c0_0, %c0_1] : memref<1x2x128xf32, #tpu.memory_space<vmem>>, vector<1x2x128xf32>
    %1 = vector.extract_strided_slice %0 {offsets = [0, 0, 0], sizes = [1, 1, 128], strides = [1, 1, 1]} : vector<1x2x128xf32> to vector<1x1x128xf32>
    %2 = vector.shape_cast %1 : vector<1x1x128xf32> to vector<1x128xf32>
    %3 = vector.shape_cast %2 : vector<1x128xf32> to vector<1x1x128xf32>
    %cst = arith.constant dense<0x7F800000> : vector<1xf32>
    %4 = vector.multi_reduction <minimumf>, %3, %cst [1, 2] : vector<1x1x128xf32> to vector<1xf32>
    %5 = vector.shape_cast %4 : vector<1xf32> to vector<1x1x1xf32>
    %6 = vector.extract %5[0, 0, 0] : f32 from vector<1x1x1xf32>
    %cst_2 = arith.constant 0.000000e+00 : f32
    %7 = arith.minimumf %6, %cst_2 : f32
    %8 = vector.extract_strided_slice %0 {offsets = [0, 1, 0], sizes = [1, 1, 128], strides = [1, 1, 1]} : vector<1x2x128xf32> to vector<1x1x128xf32>
    %9 = vector.shape_cast %8 : vector<1x1x128xf32> to vector<1x128xf32>
    %10 = vector.shape_cast %9 : vector<1x128xf32> to vector<1x1x128xf32>
    %cst_3 = arith.constant dense<0xFF800000> : vector<1xf32>
    %11 = vector.multi_reduction <maximumf>, %10, %cst_3 [1, 2] : vector<1x1x128xf32> to vector<1xf32>
    %12 = vector.shape_cast %11 : vector<1xf32> to vector<1x1x1xf32>
    %13 = vector.extract %12[0, 0, 0] : f32 from vector<1x1x1xf32>
    %cst_4 = arith.constant 0.000000e+00 : f32
    %14 = arith.maximumf %13, %cst_4 : f32
    %15 = arith.subf %14, %7 : f32
    %cst_5 = arith.constant 2.550000e+02 : f32
    %16 = arith.divf %15, %cst_5 : f32
    %cst_6 = arith.constant 0.000000e+00 : f32
    %17 = arith.cmpf oeq, %16, %cst_6 : f32
    %cst_7 = arith.constant 1.000000e+00 : f32
    %18 = arith.select %17, %cst_7, %16 : f32
    %cst_8 = arith.constant 1.000000e+00 : f32
    %19 = arith.divf %cst_8, %18 : f32
    %20 = arith.mulf %7, %19 : f32
    %21 = math.roundeven %20 : f32
    %c0_9 = arith.constant 0 : index
    %c0_10 = arith.constant 0 : index
    %22 = vector.load %arg1[%c0_9, %c0_10] : memref<512x128xf32, #tpu.memory_space<vmem>>, vector<512x128xf32>
    %23 = vector.extract_strided_slice %22 {offsets = [0, 0], sizes = [512, 8], strides = [1, 1]} : vector<512x128xf32> to vector<512x8xf32>
    %24 = vector.broadcast %19 : f32 to vector<512x8xf32>
    %25 = arith.mulf %23, %24 : vector<512x8xf32>
    %26 = math.roundeven %25 : vector<512x8xf32>
    %27 = vector.broadcast %21 : f32 to vector<512x8xf32>
    %28 = arith.subf %26, %27 : vector<512x8xf32>
    %cst_11 = arith.constant 0.000000e+00 : f32
    %cst_12 = arith.constant 2.550000e+02 : f32
    %29 = vector.broadcast %cst_11 : f32 to vector<512x8xf32>
    %30 = arith.maximumf %29, %28 : vector<512x8xf32>
    %31 = vector.broadcast %cst_12 : f32 to vector<512x8xf32>
    %32 = arith.minimumf %31, %30 : vector<512x8xf32>
    %33 = vector.broadcast %21 : f32 to vector<512x8xf32>
    %34 = arith.addf %32, %33 : vector<512x8xf32>
    %35 = vector.broadcast %18 : f32 to vector<512x8xf32>
    %36 = arith.mulf %34, %35 : vector<512x8xf32>
    %c0_13 = arith.constant 0 : index
    %c0_14 = arith.constant 0 : index
    %37 = vector.load %arg3[%c0_13, %c0_14] : memref<512x8xf32, #tpu.memory_space<vmem>>, vector<512x8xf32>
    tpu.vector_store %arg3[%c0_13, %c0_14], %36 {strides = array<i32>} : memref<512x8xf32, #tpu.memory_space<vmem>>, vector<512x8xf32>,
    return
  }
  func.func @transform_0(%arg0: i32) -> (i32, i32) {
    %c0_i32 = arith.constant 0 : i32
    %c0_i32_0 = arith.constant 0 : i32
    return %arg0, %c0_i32 : i32, i32
  }
  func.func @transform_1(%arg0: i32) -> (i32, i32, i32) {
    %c0_i32 = arith.constant 0 : i32
    %c0_i32_0 = arith.constant 0 : i32
    %c0_i32_1 = arith.constant 0 : i32
    %c0_i32_2 = arith.constant 0 : i32
    return %c0_i32, %c0_i32_0, %c0_i32_1 : i32, i32, i32
  }
  func.func @transform_2(%arg0: i32) -> (i32, i32) {
    %c0_i32 = arith.constant 0 : i32
    %c0_i32_0 = arith.constant 0 : i32
    return %arg0, %c0_i32 : i32, i32
  }
}

</mosaic_0001>

<llo_original>
// kernel: lazy_quantize_wrapper_conv2d.3
$region0: #{lazy_quantize_wrapper_conv2d.3}
  #allocation0 [shape = 'u32[]', space=smem, size = 0x4, offset = 0x4, fixed_abs, tag = 'smem constant byte address 0x4 - core index']
  #allocation1 [shape = 'u32[144,128]{1,0:T(1,128)}', space=vmem, size = 0x12000, scoped, tag = 'internal scratch']
  %s0 = inlined_call_operand.vmem [shape: f32[128,128], index: 0, kind: input, shape index: {}]
  %s1 = inlined_call_operand.vmem [shape: f32[1,128], index: 1, kind: input, shape index: {}]
  %s2 = inlined_call_operand.vmem [shape: bf16[128,128], index: 2, kind: output, shape index: {0}]
  %s3 = inlined_call_operand.hbm [shape: f32[1,1], index: 3, kind: output, shape index: {1}]
  %s4 = inlined_call_operand.vmem [shape: f32[1,128], index: 4, kind: output, shape index: {2}]
  %5 = xla_tuple %s2, %s3, %s4
  %s6 = sld [smem:[#allocation0]]
  $region34: #{lazy_quantize_wrapper_conv2d.3} parent=0
    _
  %s8 = ssub.s32 1, %s6
  %s9 = scalar_select 0, %s8, %s6
  $region1: #{lazy_quantize_wrapper_conv2d.3} parent=0
    #allocation2 [shape = 'u8[512]{0}', space=vmem, size = 0x400, scoped, tag = 'output window, operand 1, single buffered']
    #allocation3 [shape = 's32[1]{0}', space=sflag, size = 0x4, scoped, tag = 'scoped memory for lazy_quantize_wrapper_conv2d.3']
    %10 = vsyncpa [#allocation3], 0
    // Predicated region
    $region2: #{lazy_quantize_wrapper_conv2d.3} parent=1 // pred_check
      _
    $region3: #{lazy_quantize_wrapper_conv2d.3} parent=1 // pred_check_branch
      %12 = sbr.rel (0) target = $region5
    $region4: #{lazy_quantize_wrapper_conv2d.3} parent=1 // pred_region
      _
    $region5: #{lazy_quantize_wrapper_conv2d.3} parent=1 // pred_fallthru
      _
    // Predicated region
    $region6: #{lazy_quantize_wrapper_conv2d.3} parent=1 // pred_check
      _
    $region7: #{lazy_quantize_wrapper_conv2d.3} parent=1 // pred_check_branch
      %14 = sbr.rel (0) target = $region9
    $region8: #{lazy_quantize_wrapper_conv2d.3} parent=1 // pred_region
      _
    $region9: #{lazy_quantize_wrapper_conv2d.3} parent=1 // pred_fallthru
      _
    %v15 = vld [vmem:[%s0] sm:$0xff]
    %v16 = vld [vmem:[%s0 + $0x8] sm:$0xff]
    %v17 = vld [vmem:[%s0 + $0x10] sm:$0xff]
    %v18 = vld [vmem:[%s0 + $0x18] sm:$0xff]
    %v19 = vld [vmem:[%s0 + $0x20] sm:$0xff]
    %v20 = vld [vmem:[%s0 + $0x28] sm:$0xff]
    %v21 = vld [vmem:[%s0 + $0x30] sm:$0xff]
    %v22 = vld [vmem:[%s0 + $0x38] sm:$0xff]
    %v23 = vld [vmem:[%s0 + $0x40] sm:$0xff]
    %v24 = vld [vmem:[%s0 + $0x48] sm:$0xff]
    %v25 = vld [vmem:[%s0 + $0x50] sm:$0xff]
    %v26 = vld [vmem:[%s0 + $0x58] sm:$0xff]
    %v27 = vld [vmem:[%s0 + $0x60] sm:$0xff]
    %v28 = vld [vmem:[%s0 + $0x68] sm:$0xff]
    %v29 = vld [vmem:[%s0 + $0x70] sm:$0xff]
    %v30 = vld [vmem:[%s0 + $0x78] sm:$0xff]
    %v31 = vmin.f32 %v15, %v19
    %v32 = vmin.f32 %v16, %v20
    %v33 = vmin.f32 %v17, %v21
    %v34 = vmin.f32 %v18, %v22
    %v35 = vmin.f32 %v31, %v23
    %v36 = vmin.f32 %v32, %v24
    %v37 = vmin.f32 %v33, %v25
    %v38 = vmin.f32 %v34, %v26
    %v39 = vmin.f32 %v35, %v27
    %v40 = vmin.f32 %v36, %v28
    %v41 = vmin.f32 %v37, %v29
    %v42 = vmin.f32 %v38, %v30
    %v43 = vmin.f32 %v39, %v40
    %v44 = vmin.f32 %v41, %v42
    %v45 = vmin.f32 %v43, %v44
    %46 = vmin.xlane.f32.xlu0 %v45
    %v47 = vpop.xlane.xlu0 %46
    %v48 = vrot.slane %v47, 4
    %v49 = vmin.f32 %v47, %v48
    %v50 = vrot.slane %v49, 2
    %v51 = vmin.f32 %v49, %v50
    %v52 = vrot.slane %v51, 1
    %v53 = vmin.f32 %v51, %v52
    %s54 = vtos %v53
    %s55 = smin.f32 %s54, 0.0
    %v56 = vmax.f32 %v15, %v19
    %v57 = vmax.f32 %v16, %v20
    %v58 = vmax.f32 %v17, %v21
    %v59 = vmax.f32 %v18, %v22
    %v60 = vmax.f32 %v56, %v23
    %v61 = vmax.f32 %v57, %v24
    %v62 = vmax.f32 %v58, %v25
    %v63 = vmax.f32 %v59, %v26
    %v64 = vmax.f32 %v60, %v27
    %v65 = vmax.f32 %v61, %v28
    %v66 = vmax.f32 %v62, %v29
    %v67 = vmax.f32 %v63, %v30
    %v68 = vmax.f32 %v64, %v65
    %v69 = vmax.f32 %v66, %v67
    %v70 = vmax.f32 %v68, %v69
    %71 = vmax.xlane.f32.xlu0 %v70
    %v72 = vpop.xlane.xlu0 %71
    %v73 = vrot.slane %v72, 4
    %v74 = vmax.f32 %v72, %v73
    %v75 = vrot.slane %v74, 2
    %v76 = vmax.f32 %v74, %v75
    %v77 = vrot.slane %v76, 1
    %v78 = vmax.f32 %v76, %v77
    %s79 = vtos %v78
    %s80 = smax.f32 %s79, 0.0
    %s81 = ssub.f32 %s80, %s55
    %v82 = vrcp.pop 255.0
    %s83 = vtos %v82
    %s84 = smul.f32 %s81, %s83
    %p85 = scmp.eq.f32.partialorder %s84, 0.0
    %s86 = scalar_select %p85, 1.0, %s84
    %v87 = vstv %s86
    %v88 = vrcp.pop %v87
    %s89 = vtos %v88
    %s90 = smul.f32 %s55, %s89
    %s91 = scvt.f32.s32 %s90
    %s92 = scvt.s32.f32 %s91
    %s93 = sand.u32 2147483647, %s92
    %s94 = sand.u32 %s90, 2147483648
    %s95 = sor.u32 %s93, %s94
    %s96 = sand.u32 2147483647, %s90
    %p97 = scmp.lt.f32.partialorder %s96, 2.1474836e+09
    %s98 = scalar_select %p97, %s95, %s90
    %v99 = vstv %s86
    %v100 = vrcp.pop %v99
    %v101 = vmul.f32 %v15, %v100
    %v102 = vmul.f32 %v16, %v100
    %v103 = vmul.f32 %v17, %v100
    %v104 = vmul.f32 %v18, %v100
    %v105 = vmul.f32 %v19, %v100
    %v106 = vmul.f32 %v20, %v100
    %v107 = vmul.f32 %v21, %v100
    %v108 = vmul.f32 %v22, %v100
    %v109 = vmul.f32 %v23, %v100
    %v110 = vmul.f32 %v24, %v100
    %v111 = vmul.f32 %v25, %v100
    %v112 = vmul.f32 %v26, %v100
    %v113 = vmul.f32 %v27, %v100
    %v114 = vmul.f32 %v28, %v100
    %v115 = vmul.f32 %v29, %v100
    %v116 = vmul.f32 %v30, %v100
    %v117 = vround.ne.pseudo %v101
    %v118 = vround.ne.pseudo %v102
    %v119 = vround.ne.pseudo %v103
    %v120 = vround.ne.pseudo %v104
    %v121 = vround.ne.pseudo %v105
    %v122 = vround.ne.pseudo %v106
    %v123 = vround.ne.pseudo %v107
    %v124 = vround.ne.pseudo %v108
    %v125 = vround.ne.pseudo %v109
    %v126 = vround.ne.pseudo %v110
    %v127 = vround.ne.pseudo %v111
    %v128 = vround.ne.pseudo %v112
    %v129 = vround.ne.pseudo %v113
    %v130 = vround.ne.pseudo %v114
    %v131 = vround.ne.pseudo %v115
    %v132 = vround.ne.pseudo %v116
    %v133 = vstv %s98
    %v134 = vsub.f32 %v117, %v133
    %v135 = vsub.f32 %v118, %v133
    %v136 = vsub.f32 %v119, %v133
    %v137 = vsub.f32 %v120, %v133
    %v138 = vsub.f32 %v121, %v133
    %v139 = vsub.f32 %v122, %v133
    %v140 = vsub.f32 %v123, %v133
    %v141 = vsub.f32 %v124, %v133
    %v142 = vsub.f32 %v125, %v133
    %v143 = vsub.f32 %v126, %v133
    %v144 = vsub.f32 %v127, %v133
    %v145 = vsub.f32 %v128, %v133
    %v146 = vsub.f32 %v129, %v133
    %v147 = vsub.f32 %v130, %v133
    %v148 = vsub.f32 %v131, %v133
    %v149 = vsub.f32 %v132, %v133
    %v150 = vmax.f32 %v134, 0.0
    %v151 = vmax.f32 %v135, 0.0
    %v152 = vmax.f32 %v136, 0.0
    %v153 = vmax.f32 %v137, 0.0
    %v154 = vmax.f32 %v138, 0.0
    %v155 = vmax.f32 %v139, 0.0
    %v156 = vmax.f32 %v140, 0.0
    %v157 = vmax.f32 %v141, 0.0
    %v158 = vmax.f32 %v142, 0.0
    %v159 = vmax.f32 %v143, 0.0
    %v160 = vmax.f32 %v144, 0.0
    %v161 = vmax.f32 %v145, 0.0
    %v162 = vmax.f32 %v146, 0.0
    %v163 = vmax.f32 %v147, 0.0
    %v164 = vmax.f32 %v148, 0.0
    %v165 = vmax.f32 %v149, 0.0
    %v166 = vmin.f32 %v150, 255.0
    %v167 = vmin.f32 %v151, 255.0
    %v168 = vmin.f32 %v152, 255.0
    %v169 = vmin.f32 %v153, 255.0
    %v170 = vmin.f32 %v154, 255.0
    %v171 = vmin.f32 %v155, 255.0
    %v172 = vmin.f32 %v156, 255.0
    %v173 = vmin.f32 %v157, 255.0
    %v174 = vmin.f32 %v158, 255.0
    %v175 = vmin.f32 %v159, 255.0
    %v176 = vmin.f32 %v160, 255.0
    %v177 = vmin.f32 %v161, 255.0
    %v178 = vmin.f32 %v162, 255.0
    %v179 = vmin.f32 %v163, 255.0
    %v180 = vmin.f32 %v164, 255.0
    %v181 = vmin.f32 %v165, 255.0
    %v182 = vadd.f32 %v166, %v133
    %v183 = vadd.f32 %v167, %v133
    %v184 = vadd.f32 %v168, %v133
    %v185 = vadd.f32 %v169, %v133
    %v186 = vadd.f32 %v170, %v133
    %v187 = vadd.f32 %v171, %v133
    %v188 = vadd.f32 %v172, %v133
    %v189 = vadd.f32 %v173, %v133
    %v190 = vadd.f32 %v174, %v133
    %v191 = vadd.f32 %v175, %v133
    %v192 = vadd.f32 %v176, %v133
    %v193 = vadd.f32 %v177, %v133
    %v194 = vadd.f32 %v178, %v133
    %v195 = vadd.f32 %v179, %v133
    %v196 = vadd.f32 %v180, %v133
    %v197 = vadd.f32 %v181, %v133
    %v198 = vpack.c.bf16 %v183, %v182
    %v199 = vpack.c.bf16 %v185, %v184
    %v200 = vpack.c.bf16 %v187, %v186
    %v201 = vpack.c.bf16 %v189, %v188
    %v202 = vpack.c.bf16 %v191, %v190
    %v203 = vpack.c.bf16 %v193, %v192
    %v204 = vpack.c.bf16 %v195, %v194
    %v205 = vpack.c.bf16 %v197, %v196
    %v214 = vunpack.c.l.b16 %v198
    %v215 = vunpack.c.h.b16 %v198
    %v216 = vunpack.c.l.b16 %v199
    %v217 = vunpack.c.h.b16 %v199
    %v218 = vunpack.c.l.b16 %v200
    %v219 = vunpack.c.h.b16 %v200
    %v220 = vunpack.c.l.b16 %v201
    %v221 = vunpack.c.h.b16 %v201
    %v222 = vunpack.c.l.b16 %v202
    %v223 = vunpack.c.h.b16 %v202
    %v224 = vunpack.c.l.b16 %v203
    %v225 = vunpack.c.h.b16 %v203
    %v226 = vunpack.c.l.b16 %v204
    %v227 = vunpack.c.h.b16 %v204
    %v228 = vunpack.c.l.b16 %v205
    %v229 = vunpack.c.h.b16 %v205
    %v230 = vpack.c.b16 %v214, %v214
    %v231 = vpack.c.b16 %v215, %v215
    %v232 = vpack.c.b16 %v216, %v216
    %v233 = vpack.c.b16 %v217, %v217
    %v234 = vpack.c.b16 %v218, %v218
    %v235 = vpack.c.b16 %v219, %v219
    %v236 = vpack.c.b16 %v220, %v220
    %v237 = vpack.c.b16 %v221, %v221
    %v238 = vpack.c.b16 %v222, %v222
    %v239 = vpack.c.b16 %v223, %v223
    %v240 = vpack.c.b16 %v224, %v224
    %v241 = vpack.c.b16 %v225, %v225
    %v242 = vpack.c.b16 %v226, %v226
    %v243 = vpack.c.b16 %v227, %v227
    %v244 = vpack.c.b16 %v228, %v228
    %v245 = vpack.c.b16 %v229, %v229
    %262 = vst [vmem:[%s2] sm:$0xf] %v230
    %263 = vst [vmem:[%s2 + $0x4] sm:$0xf] %v231
    %264 = vst [vmem:[%s2 + $0x8] sm:$0xf] %v232
    %265 = vst [vmem:[%s2 + $0xc] sm:$0xf] %v233
    %266 = vst [vmem:[%s2 + $0x10] sm:$0xf] %v234
    %267 = vst [vmem:[%s2 + $0x14] sm:$0xf] %v235
    %268 = vst [vmem:[%s2 + $0x18] sm:$0xf] %v236
    %269 = vst [vmem:[%s2 + $0x1c] sm:$0xf] %v237
    %270 = vst [vmem:[%s2 + $0x20] sm:$0xf] %v238
    %271 = vst [vmem:[%s2 + $0x24] sm:$0xf] %v239
    %272 = vst [vmem:[%s2 + $0x28] sm:$0xf] %v240
    %273 = vst [vmem:[%s2 + $0x2c] sm:$0xf] %v241
    %274 = vst [vmem:[%s2 + $0x30] sm:$0xf] %v242
    %275 = vst [vmem:[%s2 + $0x34] sm:$0xf] %v243
    %276 = vst [vmem:[%s2 + $0x38] sm:$0xf] %v244
    %277 = vst [vmem:[%s2 + $0x3c] sm:$0xf] %v245
    %vm278 = vcmask 0
    %279 = vst.msk [vmem:[#allocation2] sm:$0x1] %vm278, %v99
    %v280 = vld [vmem:[%s1] sm:$0x1]
    %vm281 = vcmask 1040384
    %v282 = vsel %vm281, %v280, inf
    %283 = vmin.xlane.f32.xlu0 %v282
    %v284 = vpop.xlane.xlu0 %283
    %v285 = vrot.slane %v284, 4
    %v286 = vmin.f32 %v284, %v285
    %v287 = vrot.slane %v286, 2
    %v288 = vmin.f32 %v286, %v287
    %v289 = vrot.slane %v288, 1
    %v290 = vmin.f32 %v288, %v289
    %s291 = vtos %v290
    %s292 = smin.f32 %s291, 0.0
    %v293 = vsel %vm281, %v280, -inf
    %294 = vmax.xlane.f32.xlu0 %v293
    %v295 = vpop.xlane.xlu0 %294
    %v296 = vrot.slane %v295, 4
    %v297 = vmax.f32 %v295, %v296
    %v298 = vrot.slane %v297, 2
    %v299 = vmax.f32 %v297, %v298
    %v300 = vrot.slane %v299, 1
    %v301 = vmax.f32 %v299, %v300
    %s302 = vtos %v301
    %s303 = smax.f32 %s302, 0.0
    %s304 = ssub.f32 %s303, %s292
    %v305 = vrcp.pop 255.0
    %s306 = vtos %v305
    %s307 = smul.f32 %s304, %s306
    %p308 = scmp.eq.f32.partialorder %s307, 0.0
    %s309 = scalar_select %p308, 1.0, %s307
    %v310 = vstv %s309
    %v311 = vrcp.pop %v310
    %s312 = vtos %v311
    %s313 = smul.f32 %s292, %s312
    %s314 = scvt.f32.s32 %s313
    %s315 = scvt.s32.f32 %s314
    %s316 = sand.u32 2147483647, %s315
    %s317 = sand.u32 %s313, 2147483648
    %s318 = sor.u32 %s316, %s317
    %s319 = sand.u32 2147483647, %s313
    %p320 = scmp.lt.f32.partialorder %s319, 2.1474836e+09
    %s321 = scalar_select %p320, %s318, %s313
    %v322 = vstv %s309
    %v323 = vrcp.pop %v322
    %v324 = vmul.f32 %v280, %v323
    %v325 = vround.ne.pseudo %v324
    %v326 = vstv %s321
    %v327 = vsub.f32 %v325, %v326
    %v328 = vmax.f32 %v327, 0.0
    %v329 = vmin.f32 %v328, 255.0
    %v330 = vadd.f32 %v329, %v326
    %v331 = vmul.f32 %v330, %v322
    %332 = vst [vmem:[%s4] sm:$0x1] %v331
    // Predicated region
    $region10: #{lazy_quantize_wrapper_conv2d.3} parent=1 // pred_check
      _
    $region11: #{lazy_quantize_wrapper_conv2d.3} parent=1 // pred_check_branch
      %334 = sbr.rel (0) target = $region13
    $region12: #{lazy_quantize_wrapper_conv2d.3} parent=1 // pred_region
      _
    $region13: #{lazy_quantize_wrapper_conv2d.3} parent=1 // pred_fallthru
      _
    // Predicated region
    $region14: #{lazy_quantize_wrapper_conv2d.3} parent=1 // pred_check
      _
    $region15: #{lazy_quantize_wrapper_conv2d.3} parent=1 // pred_check_branch
      %336 = sbr.rel (0) target = $region17
    $region16: #{lazy_quantize_wrapper_conv2d.3} parent=1 // pred_region
      %s338 = ssub.s32 16, 16
      %339 = vsyncadd [#allocation3], %s338
      %s341 = sshll.u32 [#allocation2], 4
      %s342 = int_to_ptr.vmem [resolvable:$true] %s341
      %344 = dma.vmem_to_hbm [thread:$0]  %s342, 16, %s3, [#allocation3]
    $region17: #{lazy_quantize_wrapper_conv2d.3} parent=1 // pred_fallthru
      _
    // Predicated region
    $region18: #{lazy_quantize_wrapper_conv2d.3} parent=1 // pred_check
      _
    $region19: #{lazy_quantize_wrapper_conv2d.3} parent=1 // pred_check_branch
      %346 = sbr.rel (0) target = $region21
    $region20: #{lazy_quantize_wrapper_conv2d.3} parent=1 // pred_region
      _
    $region21: #{lazy_quantize_wrapper_conv2d.3} parent=1 // pred_fallthru
      _
    // Predicated region
    $region22: #{lazy_quantize_wrapper_conv2d.3} parent=1 // pred_check
      _
    $region23: #{lazy_quantize_wrapper_conv2d.3} parent=1 // pred_check_branch
      %348 = sbr.rel (0) target = $region25
    $region24: #{lazy_quantize_wrapper_conv2d.3} parent=1 // pred_region
      _
    $region25: #{lazy_quantize_wrapper_conv2d.3} parent=1 // pred_fallthru
      _
    // Predicated region
    $region26: #{lazy_quantize_wrapper_conv2d.3} parent=1 // pred_check
      _
    $region27: #{lazy_quantize_wrapper_conv2d.3} parent=1 // pred_check_branch
      %350 = sbr.rel (0) target = $region29
    $region28: #{lazy_quantize_wrapper_conv2d.3} parent=1 // pred_region
      %351 = dma.done [#allocation3], 16
    $region29: #{lazy_quantize_wrapper_conv2d.3} parent=1 // pred_fallthru
      _
    // Predicated region
    $region30: #{lazy_quantize_wrapper_conv2d.3} parent=1 // pred_check
      _
    $region31: #{lazy_quantize_wrapper_conv2d.3} parent=1 // pred_check_branch
      %353 = sbr.rel (0) target = $region33
    $region32: #{lazy_quantize_wrapper_conv2d.3} parent=1 // pred_region
      _
    $region33: #{lazy_quantize_wrapper_conv2d.3} parent=1 // pred_fallthru
      _
    %354 = vsyncpa [#allocation3], 1

// kernel: lazy_quantize_wrapper_conv2d.5
$region0: #{lazy_quantize_wrapper_conv2d.5}
  #allocation0 [shape = 'u32[]', space=smem, size = 0x4, offset = 0x4, fixed_abs, tag = 'smem constant byte address 0x4 - core index']
  #allocation1 [shape = 'u32[144,128]{1,0:T(1,128)}', space=vmem, size = 0x12000, scoped, tag = 'internal scratch']
  %s0 = inlined_call_operand.vmem [shape: f32[512,128], index: 0, kind: input, shape index: {}]
  %s1 = inlined_call_operand.vmem [shape: f32[1,2,128], index: 1, kind: input, shape index: {}]
  %s2 = inlined_call_operand.vmem [shape: f32[512,8], index: 2, kind: output, shape index: {}]
  %s3 = sld [smem:[#allocation0]]
  $region18: #{lazy_quantize_wrapper_conv2d.5} parent=0
    _
  %s5 = ssub.s32 1, %s3
  %s6 = scalar_select 0, %s5, %s3
  // Predicated region
  $region2: #{lazy_quantize_wrapper_conv2d.5} parent=0 // pred_check
    _
  $region3: #{lazy_quantize_wrapper_conv2d.5} parent=0 // pred_check_branch
    %8 = sbr.rel (0) target = $region5
  $region4: #{lazy_quantize_wrapper_conv2d.5} parent=0 // pred_region
    _
  $region5: #{lazy_quantize_wrapper_conv2d.5} parent=0 // pred_fallthru
    _
  // Predicated region
  $region6: #{lazy_quantize_wrapper_conv2d.5} parent=0 // pred_check
    _
  $region7: #{lazy_quantize_wrapper_conv2d.5} parent=0 // pred_check_branch
    %10 = sbr.rel (0) target = $region9
  $region8: #{lazy_quantize_wrapper_conv2d.5} parent=0 // pred_region
    _
  $region9: #{lazy_quantize_wrapper_conv2d.5} parent=0 // pred_fallthru
    _
  %v11 = vld [vmem:[%s1] sm:$0x3]
  %vm12 = vcmask 1040384
  %v13 = vsel %vm12, %v11, inf
  %14 = vmin.xlane.f32.xlu0 %v13
  %v15 = vpop.xlane.xlu0 %14
  %v16 = vrot.slane %v15, 4
  %v17 = vmin.f32 %v15, %v16
  %v18 = vrot.slane %v17, 2
  %v19 = vmin.f32 %v17, %v18
  %v20 = vrot.slane %v19, 1
  %v21 = vmin.f32 %v19, %v20
  %s22 = vtos %v21
  %s23 = smin.f32 %s22, 0.0
  %vm24 = vcmask 1041409
  %v25 = vsel %vm24, %v11, -inf
  %26 = vmax.xlane.f32.xlu0 %v25
  %v27 = vpop.xlane.xlu0 %26
  %v28 = vrot.slane %v27, 4
  %v29 = vmax.f32 %v27, %v28
  %v30 = vrot.slane %v29, 2
  %v31 = vmax.f32 %v29, %v30
  %v32 = vrot.slane %v31, 1
  %v33 = vmax.f32 %v31, %v32
  %s34 = vtos %v33
  %s35 = smax.f32 %s34, 0.0
  %s36 = ssub.f32 %s35, %s23
  %v37 = vrcp.pop 255.0
  %s38 = vtos %v37
  %s39 = smul.f32 %s36, %s38
  %p40 = scmp.eq.f32.partialorder %s39, 0.0
  %s41 = scalar_select %p40, 1.0, %s39
  %v42 = vstv %s41
  %v43 = vrcp.pop %v42
  %s44 = vtos %v43
  %s45 = smul.f32 %s23, %s44
  %s46 = scvt.f32.s32 %s45
  %s47 = scvt.s32.f32 %s46
  %s48 = sand.u32 2147483647, %s47
  %s49 = sand.u32 %s45, 2147483648
  %s50 = sor.u32 %s48, %s49
  %s51 = sand.u32 2147483647, %s45
  %p52 = scmp.lt.f32.partialorder %s51, 2.1474836e+09
  %s53 = scalar_select %p52, %s50, %s45
  %v54 = vld [vmem:[%s0] sm:$0xff]
  %v55 = vld [vmem:[%s0 + $0x8] sm:$0xff]
  %v56 = vld [vmem:[%s0 + $0x10] sm:$0xff]
  %v57 = vld [vmem:[%s0 + $0x18] sm:$0xff]
  %v58 = vld [vmem:[%s0 + $0x20] sm:$0xff]
  %v59 = vld [vmem:[%s0 + $0x28] sm:$0xff]
  %v60 = vld [vmem:[%s0 + $0x30] sm:$0xff]
  %v61 = vld [vmem:[%s0 + $0x38] sm:$0xff]
  %v62 = vld [vmem:[%s0 + $0x40] sm:$0xff]
  %v63 = vld [vmem:[%s0 + $0x48] sm:$0xff]
  %v64 = vld [vmem:[%s0 + $0x50] sm:$0xff]
  %v65 = vld [vmem:[%s0 + $0x58] sm:$0xff]
  %v66 = vld [vmem:[%s0 + $0x60] sm:$0xff]
  %v67 = vld [vmem:[%s0 + $0x68] sm:$0xff]
  %v68 = vld [vmem:[%s0 + $0x70] sm:$0xff]
  %v69 = vld [vmem:[%s0 + $0x78] sm:$0xff]
  %v70 = vld [vmem:[%s0 + $0x80] sm:$0xff]
  %v71 = vld [vmem:[%s0 + $0x88] sm:$0xff]
  %v72 = vld [vmem:[%s0 + $0x90] sm:$0xff]
  %v73 = vld [vmem:[%s0 + $0x98] sm:$0xff]
  %v74 = vld [vmem:[%s0 + $0xa0] sm:$0xff]
  %v75 = vld [vmem:[%s0 + $0xa8] sm:$0xff]
  %v76 = vld [vmem:[%s0 + $0xb0] sm:$0xff]
  %v77 = vld [vmem:[%s0 + $0xb8] sm:$0xff]
  %v78 = vld [vmem:[%s0 + $0xc0] sm:$0xff]
  %v79 = vld [vmem:[%s0 + $0xc8] sm:$0xff]
  %v80 = vld [vmem:[%s0 + $0xd0] sm:$0xff]
  %v81 = vld [vmem:[%s0 + $0xd8] sm:$0xff]
  %v82 = vld [vmem:[%s0 + $0xe0] sm:$0xff]
  %v83 = vld [vmem:[%s0 + $0xe8] sm:$0xff]
  %v84 = vld [vmem:[%s0 + $0xf0] sm:$0xff]
  %v85 = vld [vmem:[%s0 + $0xf8] sm:$0xff]
  %v86 = vld [vmem:[%s0 + $0x100] sm:$0xff]
  %v87 = vld [vmem:[%s0 + $0x108] sm:$0xff]
  %v88 = vld [vmem:[%s0 + $0x110] sm:$0xff]
  %v89 = vld [vmem:[%s0 + $0x118] sm:$0xff]
  %v90 = vld [vmem:[%s0 + $0x120] sm:$0xff]
  %v91 = vld [vmem:[%s0 + $0x128] sm:$0xff]
  %v92 = vld [vmem:[%s0 + $0x130] sm:$0xff]
  %v93 = vld [vmem:[%s0 + $0x138] sm:$0xff]
  %v94 = vld [vmem:[%s0 + $0x140] sm:$0xff]
  %v95 = vld [vmem:[%s0 + $0x148] sm:$0xff]
  %v96 = vld [vmem:[%s0 + $0x150] sm:$0xff]
  %v97 = vld [vmem:[%s0 + $0x158] sm:$0xff]
  %v98 = vld [vmem:[%s0 + $0x160] sm:$0xff]
  %v99 = vld [vmem:[%s0 + $0x168] sm:$0xff]
  %v100 = vld [vmem:[%s0 + $0x170] sm:$0xff]
  %v101 = vld [vmem:[%s0 + $0x178] sm:$0xff]
  %v102 = vld [vmem:[%s0 + $0x180] sm:$0xff]
  %v103 = vld [vmem:[%s0 + $0x188] sm:$0xff]
  %v104 = vld [vmem:[%s0 + $0x190] sm:$0xff]
  %v105 = vld [vmem:[%s0 + $0x198] sm:$0xff]
  %v106 = vld [vmem:[%s0 + $0x1a0] sm:$0xff]
  %v107 = vld [vmem:[%s0 + $0x1a8] sm:$0xff]
  %v108 = vld [vmem:[%s0 + $0x1b0] sm:$0xff]
  %v109 = vld [vmem:[%s0 + $0x1b8] sm:$0xff]
  %v110 = vld [vmem:[%s0 + $0x1c0] sm:$0xff]
  %v111 = vld [vmem:[%s0 + $0x1c8] sm:$0xff]
  %v112 = vld [vmem:[%s0 + $0x1d0] sm:$0xff]
  %v113 = vld [vmem:[%s0 + $0x1d8] sm:$0xff]
  %v114 = vld [vmem:[%s0 + $0x1e0] sm:$0xff]
  %v115 = vld [vmem:[%s0 + $0x1e8] sm:$0xff]
  %v116 = vld [vmem:[%s0 + $0x1f0] sm:$0xff]
  %v117 = vld [vmem:[%s0 + $0x1f8] sm:$0xff]
  %v118 = vstv %s44
  %v119 = vmul.f32 %v54, %v118
  %v120 = vmul.f32 %v55, %v118
  %v121 = vmul.f32 %v56, %v118
  %v122 = vmul.f32 %v57, %v118
  %v123 = vmul.f32 %v58, %v118
  %v124 = vmul.f32 %v59, %v118
  %v125 = vmul.f32 %v60, %v118
  %v126 = vmul.f32 %v61, %v118
  %v127 = vmul.f32 %v62, %v118
  %v128 = vmul.f32 %v63, %v118
  %v129 = vmul.f32 %v64, %v118
  %v130 = vmul.f32 %v65, %v118
  %v131 = vmul.f32 %v66, %v118
  %v132 = vmul.f32 %v67, %v118
  %v133 = vmul.f32 %v68, %v118
  %v134 = vmul.f32 %v69, %v118
  %v135 = vmul.f32 %v70, %v118
  %v136 = vmul.f32 %v71, %v118
  %v137 = vmul.f32 %v72, %v118
  %v138 = vmul.f32 %v73, %v118
  %v139 = vmul.f32 %v74, %v118
  %v140 = vmul.f32 %v75, %v118
  %v141 = vmul.f32 %v76, %v118
  %v142 = vmul.f32 %v77, %v118
  %v143 = vmul.f32 %v78, %v118
  %v144 = vmul.f32 %v79, %v118
  %v145 = vmul.f32 %v80, %v118
  %v146 = vmul.f32 %v81, %v118
  %v147 = vmul.f32 %v82, %v118
  %v148 = vmul.f32 %v83, %v118
  %v149 = vmul.f32 %v84, %v118
  %v150 = vmul.f32 %v85, %v118
  %v151 = vmul.f32 %v86, %v118
  %v152 = vmul.f32 %v87, %v118
  %v153 = vmul.f32 %v88, %v118
  %v154 = vmul.f32 %v89, %v118
  %v155 = vmul.f32 %v90, %v118
  %v156 = vmul.f32 %v91, %v118
  %v157 = vmul.f32 %v92, %v118
  %v158 = vmul.f32 %v93, %v118
  %v159 = vmul.f32 %v94, %v118
  %v160 = vmul.f32 %v95, %v118
  %v161 = vmul.f32 %v96, %v118
  %v162 = vmul.f32 %v97, %v118
  %v163 = vmul.f32 %v98, %v118
  %v164 = vmul.f32 %v99, %v118
  %v165 = vmul.f32 %v100, %v118
  %v166 = vmul.f32 %v101, %v118
  %v167 = vmul.f32 %v102, %v118
  %v168 = vmul.f32 %v103, %v118
  %v169 = vmul.f32 %v104, %v118
  %v170 = vmul.f32 %v105, %v118
  %v171 = vmul.f32 %v106, %v118
  %v172 = vmul.f32 %v107, %v118
  %v173 = vmul.f32 %v108, %v118
  %v174 = vmul.f32 %v109, %v118
  %v175 = vmul.f32 %v110, %v118
  %v176 = vmul.f32 %v111, %v118
  %v177 = vmul.f32 %v112, %v118
  %v178 = vmul.f32 %v113, %v118
  %v179 = vmul.f32 %v114, %v118
  %v180 = vmul.f32 %v115, %v118
  %v181 = vmul.f32 %v116, %v118
  %v182 = vmul.f32 %v117, %v118
  %v183 = vround.ne.pseudo %v119
  %v184 = vround.ne.pseudo %v120
  %v185 = vround.ne.pseudo %v121
  %v186 = vround.ne.pseudo %v122
  %v187 = vround.ne.pseudo %v123
  %v188 = vround.ne.pseudo %v124
  %v189 = vround.ne.pseudo %v125
  %v190 = vround.ne.pseudo %v126
  %v191 = vround.ne.pseudo %v127
  %v192 = vround.ne.pseudo %v128
  %v193 = vround.ne.pseudo %v129
  %v194 = vround.ne.pseudo %v130
  %v195 = vround.ne.pseudo %v131
  %v196 = vround.ne.pseudo %v132
  %v197 = vround.ne.pseudo %v133
  %v198 = vround.ne.pseudo %v134
  %v199 = vround.ne.pseudo %v135
  %v200 = vround.ne.pseudo %v136
  %v201 = vround.ne.pseudo %v137
  %v202 = vround.ne.pseudo %v138
  %v203 = vround.ne.pseudo %v139
  %v204 = vround.ne.pseudo %v140
  %v205 = vround.ne.pseudo %v141
  %v206 = vround.ne.pseudo %v142
  %v207 = vround.ne.pseudo %v143
  %v208 = vround.ne.pseudo %v144
  %v209 = vround.ne.pseudo %v145
  %v210 = vround.ne.pseudo %v146
  %v211 = vround.ne.pseudo %v147
  %v212 = vround.ne.pseudo %v148
  %v213 = vround.ne.pseudo %v149
  %v214 = vround.ne.pseudo %v150
  %v215 = vround.ne.pseudo %v151
  %v216 = vround.ne.pseudo %v152
  %v217 = vround.ne.pseudo %v153
  %v218 = vround.ne.pseudo %v154
  %v219 = vround.ne.pseudo %v155
  %v220 = vround.ne.pseudo %v156
  %v221 = vround.ne.pseudo %v157
  %v222 = vround.ne.pseudo %v158
  %v223 = vround.ne.pseudo %v159
  %v224 = vround.ne.pseudo %v160
  %v225 = vround.ne.pseudo %v161
  %v226 = vround.ne.pseudo %v162
  %v227 = vround.ne.pseudo %v163
  %v228 = vround.ne.pseudo %v164
  %v229 = vround.ne.pseudo %v165
  %v230 = vround.ne.pseudo %v166
  %v231 = vround.ne.pseudo %v167
  %v232 = vround.ne.pseudo %v168
  %v233 = vround.ne.pseudo %v169
  %v234 = vround.ne.pseudo %v170
  %v235 = vround.ne.pseudo %v171
  %v236 = vround.ne.pseudo %v172
  %v237 = vround.ne.pseudo %v173
  %v238 = vround.ne.pseudo %v174
  %v239 = vround.ne.pseudo %v175
  %v240 = vround.ne.pseudo %v176
  %v241 = vround.ne.pseudo %v177
  %v242 = vround.ne.pseudo %v178
  %v243 = vround.ne.pseudo %v179
  %v244 = vround.ne.pseudo %v180
  %v245 = vround.ne.pseudo %v181
  %v246 = vround.ne.pseudo %v182
  %v247 = vstv %s53
  %v248 = vsub.f32 %v183, %v247
  %v249 = vsub.f32 %v184, %v247
  %v250 = vsub.f32 %v185, %v247
  %v251 = vsub.f32 %v186, %v247
  %v252 = vsub.f32 %v187, %v247
  %v253 = vsub.f32 %v188, %v247
  %v254 = vsub.f32 %v189, %v247
  %v255 = vsub.f32 %v190, %v247
  %v256 = vsub.f32 %v191, %v247
  %v257 = vsub.f32 %v192, %v247
  %v258 = vsub.f32 %v193, %v247
  %v259 = vsub.f32 %v194, %v247
  %v260 = vsub.f32 %v195, %v247
  %v261 = vsub.f32 %v196, %v247
  %v262 = vsub.f32 %v197, %v247
  %v263 = vsub.f32 %v198, %v247
  %v264 = vsub.f32 %v199, %v247
  %v265 = vsub.f32 %v200, %v247
  %v266 = vsub.f32 %v201, %v247
  %v267 = vsub.f32 %v202, %v247
  %v268 = vsub.f32 %v203, %v247
  %v269 = vsub.f32 %v204, %v247
  %v270 = vsub.f32 %v205, %v247
  %v271 = vsub.f32 %v206, %v247
  %v272 = vsub.f32 %v207, %v247
  %v273 = vsub.f32 %v208, %v247
  %v274 = vsub.f32 %v209, %v247
  %v275 = vsub.f32 %v210, %v247
  %v276 = vsub.f32 %v211, %v247
  %v277 = vsub.f32 %v212, %v247
  %v278 = vsub.f32 %v213, %v247
  %v279 = vsub.f32 %v214, %v247
  %v280 = vsub.f32 %v215, %v247
  %v281 = vsub.f32 %v216, %v247
  %v282 = vsub.f32 %v217, %v247
  %v283 = vsub.f32 %v218, %v247
  %v284 = vsub.f32 %v219, %v247
  %v285 = vsub.f32 %v220, %v247
  %v286 = vsub.f32 %v221, %v247
  %v287 = vsub.f32 %v222, %v247
  %v288 = vsub.f32 %v223, %v247
  %v289 = vsub.f32 %v224, %v247
  %v290 = vsub.f32 %v225, %v247
  %v291 = vsub.f32 %v226, %v247
  %v292 = vsub.f32 %v227, %v247
  %v293 = vsub.f32 %v228, %v247
  %v294 = vsub.f32 %v229, %v247
  %v295 = vsub.f32 %v230, %v247
  %v296 = vsub.f32 %v231, %v247
  %v297 = vsub.f32 %v232, %v247
  %v298 = vsub.f32 %v233, %v247
  %v299 = vsub.f32 %v234, %v247
  %v300 = vsub.f32 %v235, %v247
  %v301 = vsub.f32 %v236, %v247
  %v302 = vsub.f32 %v237, %v247
  %v303 = vsub.f32 %v238, %v247
  %v304 = vsub.f32 %v239, %v247
  %v305 = vsub.f32 %v240, %v247
  %v306 = vsub.f32 %v241, %v247
  %v307 = vsub.f32 %v242, %v247
  %v308 = vsub.f32 %v243, %v247
  %v309 = vsub.f32 %v244, %v247
  %v310 = vsub.f32 %v245, %v247
  %v311 = vsub.f32 %v246, %v247
  %v312 = vmax.f32 %v248, 0.0
  %v313 = vmax.f32 %v249, 0.0
  %v314 = vmax.f32 %v250, 0.0
  %v315 = vmax.f32 %v251, 0.0
  %v316 = vmax.f32 %v252, 0.0
  %v317 = vmax.f32 %v253, 0.0
  %v318 = vmax.f32 %v254, 0.0
  %v319 = vmax.f32 %v255, 0.0
  %v320 = vmax.f32 %v256, 0.0
  %v321 = vmax.f32 %v257, 0.0
  %v322 = vmax.f32 %v258, 0.0
  %v323 = vmax.f32 %v259, 0.0
  %v324 = vmax.f32 %v260, 0.0
  %v325 = vmax.f32 %v261, 0.0
  %v326 = vmax.f32 %v262, 0.0
  %v327 = vmax.f32 %v263, 0.0
  %v328 = vmax.f32 %v264, 0.0
  %v329 = vmax.f32 %v265, 0.0
  %v330 = vmax.f32 %v266, 0.0
  %v331 = vmax.f32 %v267, 0.0
  %v332 = vmax.f32 %v268, 0.0
  %v333 = vmax.f32 %v269, 0.0
  %v334 = vmax.f32 %v270, 0.0
  %v335 = vmax.f32 %v271, 0.0
  %v336 = vmax.f32 %v272, 0.0
  %v337 = vmax.f32 %v273, 0.0
  %v338 = vmax.f32 %v274, 0.0
  %v339 = vmax.f32 %v275, 0.0
  %v340 = vmax.f32 %v276, 0.0
  %v341 = vmax.f32 %v277, 0.0
  %v342 = vmax.f32 %v278, 0.0
  %v343 = vmax.f32 %v279, 0.0
  %v344 = vmax.f32 %v280, 0.0
  %v345 = vmax.f32 %v281, 0.0
  %v346 = vmax.f32 %v282, 0.0
  %v347 = vmax.f32 %v283, 0.0
  %v348 = vmax.f32 %v284, 0.0
  %v349 = vmax.f32 %v285, 0.0
  %v350 = vmax.f32 %v286, 0.0
  %v351 = vmax.f32 %v287, 0.0
  %v352 = vmax.f32 %v288, 0.0
  %v353 = vmax.f32 %v289, 0.0
  %v354 = vmax.f32 %v290, 0.0
  %v355 = vmax.f32 %v291, 0.0
  %v356 = vmax.f32 %v292, 0.0
  %v357 = vmax.f32 %v293, 0.0
  %v358 = vmax.f32 %v294, 0.0
  %v359 = vmax.f32 %v295, 0.0
  %v360 = vmax.f32 %v296, 0.0
  %v361 = vmax.f32 %v297, 0.0
  %v362 = vmax.f32 %v298, 0.0
  %v363 = vmax.f32 %v299, 0.0
  %v364 = vmax.f32 %v300, 0.0
  %v365 = vmax.f32 %v301, 0.0
  %v366 = vmax.f32 %v302, 0.0
  %v367 = vmax.f32 %v303, 0.0
  %v368 = vmax.f32 %v304, 0.0
  %v369 = vmax.f32 %v305, 0.0
  %v370 = vmax.f32 %v306, 0.0
  %v371 = vmax.f32 %v307, 0.0
  %v372 = vmax.f32 %v308, 0.0
  %v373 = vmax.f32 %v309, 0.0
  %v374 = vmax.f32 %v310, 0.0
  %v375 = vmax.f32 %v311, 0.0
  %v376 = vmin.f32 %v312, 255.0
  %v377 = vmin.f32 %v313, 255.0
  %v378 = vmin.f32 %v314, 255.0
  %v379 = vmin.f32 %v315, 255.0
  %v380 = vmin.f32 %v316, 255.0
  %v381 = vmin.f32 %v317, 255.0
  %v382 = vmin.f32 %v318, 255.0
  %v383 = vmin.f32 %v319, 255.0
  %v384 = vmin.f32 %v320, 255.0
  %v385 = vmin.f32 %v321, 255.0
  %v386 = vmin.f32 %v322, 255.0
  %v387 = vmin.f32 %v323, 255.0
  %v388 = vmin.f32 %v324, 255.0
  %v389 = vmin.f32 %v325, 255.0
  %v390 = vmin.f32 %v326, 255.0
  %v391 = vmin.f32 %v327, 255.0
  %v392 = vmin.f32 %v328, 255.0
  %v393 = vmin.f32 %v329, 255.0
  %v394 = vmin.f32 %v330, 255.0
  %v395 = vmin.f32 %v331, 255.0
  %v396 = vmin.f32 %v332, 255.0
  %v397 = vmin.f32 %v333, 255.0
  %v398 = vmin.f32 %v334, 255.0
  %v399 = vmin.f32 %v335, 255.0
  %v400 = vmin.f32 %v336, 255.0
  %v401 = vmin.f32 %v337, 255.0
  %v402 = vmin.f32 %v338, 255.0
  %v403 = vmin.f32 %v339, 255.0
  %v404 = vmin.f32 %v340, 255.0
  %v405 = vmin.f32 %v341, 255.0
  %v406 = vmin.f32 %v342, 255.0
  %v407 = vmin.f32 %v343, 255.0
  %v408 = vmin.f32 %v344, 255.0
  %v409 = vmin.f32 %v345, 255.0
  %v410 = vmin.f32 %v346, 255.0
  %v411 = vmin.f32 %v347, 255.0
  %v412 = vmin.f32 %v348, 255.0
  %v413 = vmin.f32 %v349, 255.0
  %v414 = vmin.f32 %v350, 255.0
  %v415 = vmin.f32 %v351, 255.0
  %v416 = vmin.f32 %v352, 255.0
  %v417 = vmin.f32 %v353, 255.0
  %v418 = vmin.f32 %v354, 255.0
  %v419 = vmin.f32 %v355, 255.0
  %v420 = vmin.f32 %v356, 255.0
  %v421 = vmin.f32 %v357, 255.0
  %v422 = vmin.f32 %v358, 255.0
  %v423 = vmin.f32 %v359, 255.0
  %v424 = vmin.f32 %v360, 255.0
  %v425 = vmin.f32 %v361, 255.0
  %v426 = vmin.f32 %v362, 255.0
  %v427 = vmin.f32 %v363, 255.0
  %v428 = vmin.f32 %v364, 255.0
  %v429 = vmin.f32 %v365, 255.0
  %v430 = vmin.f32 %v366, 255.0
  %v431 = vmin.f32 %v367, 255.0
  %v432 = vmin.f32 %v368, 255.0
  %v433 = vmin.f32 %v369, 255.0
  %v434 = vmin.f32 %v370, 255.0
  %v435 = vmin.f32 %v371, 255.0
  %v436 = vmin.f32 %v372, 255.0
  %v437 = vmin.f32 %v373, 255.0
  %v438 = vmin.f32 %v374, 255.0
  %v439 = vmin.f32 %v375, 255.0
  %v440 = vadd.f32 %v376, %v247
  %v441 = vadd.f32 %v377, %v247
  %v442 = vadd.f32 %v378, %v247
  %v443 = vadd.f32 %v379, %v247
  %v444 = vadd.f32 %v380, %v247
  %v445 = vadd.f32 %v381, %v247
  %v446 = vadd.f32 %v382, %v247
  %v447 = vadd.f32 %v383, %v247
  %v448 = vadd.f32 %v384, %v247
  %v449 = vadd.f32 %v385, %v247
  %v450 = vadd.f32 %v386, %v247
  %v451 = vadd.f32 %v387, %v247
  %v452 = vadd.f32 %v388, %v247
  %v453 = vadd.f32 %v389, %v247
  %v454 = vadd.f32 %v390, %v247
  %v455 = vadd.f32 %v391, %v247
  %v456 = vadd.f32 %v392, %v247
  %v457 = vadd.f32 %v393, %v247
  %v458 = vadd.f32 %v394, %v247
  %v459 = vadd.f32 %v395, %v247
  %v460 = vadd.f32 %v396, %v247
  %v461 = vadd.f32 %v397, %v247
  %v462 = vadd.f32 %v398, %v247
  %v463 = vadd.f32 %v399, %v247
  %v464 = vadd.f32 %v400, %v247
  %v465 = vadd.f32 %v401, %v247
  %v466 = vadd.f32 %v402, %v247
  %v467 = vadd.f32 %v403, %v247
  %v468 = vadd.f32 %v404, %v247
  %v469 = vadd.f32 %v405, %v247
  %v470 = vadd.f32 %v406, %v247
  %v471 = vadd.f32 %v407, %v247
  %v472 = vadd.f32 %v408, %v247
  %v473 = vadd.f32 %v409, %v247
  %v474 = vadd.f32 %v410, %v247
  %v475 = vadd.f32 %v411, %v247
  %v476 = vadd.f32 %v412, %v247
  %v477 = vadd.f32 %v413, %v247
  %v478 = vadd.f32 %v414, %v247
  %v479 = vadd.f32 %v415, %v247
  %v480 = vadd.f32 %v416, %v247
  %v481 = vadd.f32 %v417, %v247
  %v482 = vadd.f32 %v418, %v247
  %v483 = vadd.f32 %v419, %v247
  %v484 = vadd.f32 %v420, %v247
  %v485 = vadd.f32 %v421, %v247
  %v486 = vadd.f32 %v422, %v247
  %v487 = vadd.f32 %v423, %v247
  %v488 = vadd.f32 %v424, %v247
  %v489 = vadd.f32 %v425, %v247
  %v490 = vadd.f32 %v426, %v247
  %v491 = vadd.f32 %v427, %v247
  %v492 = vadd.f32 %v428, %v247
  %v493 = vadd.f32 %v429, %v247
  %v494 = vadd.f32 %v430, %v247
  %v495 = vadd.f32 %v431, %v247
  %v496 = vadd.f32 %v432, %v247
  %v497 = vadd.f32 %v433, %v247
  %v498 = vadd.f32 %v434, %v247
  %v499 = vadd.f32 %v435, %v247
  %v500 = vadd.f32 %v436, %v247
  %v501 = vadd.f32 %v437, %v247
  %v502 = vadd.f32 %v438, %v247
  %v503 = vadd.f32 %v439, %v247
  %v504 = vstv %s41
  %v505 = vmul.f32 %v440, %v504
  %v506 = vmul.f32 %v441, %v504
  %v507 = vmul.f32 %v442, %v504
  %v508 = vmul.f32 %v443, %v504
  %v509 = vmul.f32 %v444, %v504
  %v510 = vmul.f32 %v445, %v504
  %v511 = vmul.f32 %v446, %v504
  %v512 = vmul.f32 %v447, %v504
  %v513 = vmul.f32 %v448, %v504
  %v514 = vmul.f32 %v449, %v504
  %v515 = vmul.f32 %v450, %v504
  %v516 = vmul.f32 %v451, %v504
  %v517 = vmul.f32 %v452, %v504
  %v518 = vmul.f32 %v453, %v504
  %v519 = vmul.f32 %v454, %v504
  %v520 = vmul.f32 %v455, %v504
  %v521 = vmul.f32 %v456, %v504
  %v522 = vmul.f32 %v457, %v504
  %v523 = vmul.f32 %v458, %v504
  %v524 = vmul.f32 %v459, %v504
  %v525 = vmul.f32 %v460, %v504
  %v526 = vmul.f32 %v461, %v504
  %v527 = vmul.f32 %v462, %v504
  %v528 = vmul.f32 %v463, %v504
  %v529 = vmul.f32 %v464, %v504
  %v530 = vmul.f32 %v465, %v504
  %v531 = vmul.f32 %v466, %v504
  %v532 = vmul.f32 %v467, %v504
  %v533 = vmul.f32 %v468, %v504
  %v534 = vmul.f32 %v469, %v504
  %v535 = vmul.f32 %v470, %v504
  %v536 = vmul.f32 %v471, %v504
  %v537 = vmul.f32 %v472, %v504
  %v538 = vmul.f32 %v473, %v504
  %v539 = vmul.f32 %v474, %v504
  %v540 = vmul.f32 %v475, %v504
  %v541 = vmul.f32 %v476, %v504
  %v542 = vmul.f32 %v477, %v504
  %v543 = vmul.f32 %v478, %v504
  %v544 = vmul.f32 %v479, %v504
  %v545 = vmul.f32 %v480, %v504
  %v546 = vmul.f32 %v481, %v504
  %v547 = vmul.f32 %v482, %v504
  %v548 = vmul.f32 %v483, %v504
  %v549 = vmul.f32 %v484, %v504
  %v550 = vmul.f32 %v485, %v504
  %v551 = vmul.f32 %v486, %v504
  %v552 = vmul.f32 %v487, %v504
  %v553 = vmul.f32 %v488, %v504
  %v554 = vmul.f32 %v489, %v504
  %v555 = vmul.f32 %v490, %v504
  %v556 = vmul.f32 %v491, %v504
  %v557 = vmul.f32 %v492, %v504
  %v558 = vmul.f32 %v493, %v504
  %v559 = vmul.f32 %v494, %v504
  %v560 = vmul.f32 %v495, %v504
  %v561 = vmul.f32 %v496, %v504
  %v562 = vmul.f32 %v497, %v504
  %v563 = vmul.f32 %v498, %v504
  %v564 = vmul.f32 %v499, %v504
  %v565 = vmul.f32 %v500, %v504
  %v566 = vmul.f32 %v501, %v504
  %v567 = vmul.f32 %v502, %v504
  %v568 = vmul.f32 %v503, %v504
  %vm569 = vcmask 64512
  %570 = vst.msk [vmem:[%s2] sm:$0xff] %vm569, %v505
  %571 = vst.msk [vmem:[%s2 + $0x8] sm:$0xff] %vm569, %v506
  %572 = vst.msk [vmem:[%s2 + $0x10] sm:$0xff] %vm569, %v507
  %573 = vst.msk [vmem:[%s2 + $0x18] sm:$0xff] %vm569, %v508
  %574 = vst.msk [vmem:[%s2 + $0x20] sm:$0xff] %vm569, %v509
  %575 = vst.msk [vmem:[%s2 + $0x28] sm:$0xff] %vm569, %v510
  %576 = vst.msk [vmem:[%s2 + $0x30] sm:$0xff] %vm569, %v511
  %577 = vst.msk [vmem:[%s2 + $0x38] sm:$0xff] %vm569, %v512
  %578 = vst.msk [vmem:[%s2 + $0x40] sm:$0xff] %vm569, %v513
  %579 = vst.msk [vmem:[%s2 + $0x48] sm:$0xff] %vm569, %v514
  %580 = vst.msk [vmem:[%s2 + $0x50] sm:$0xff] %vm569, %v515
  %581 = vst.msk [vmem:[%s2 + $0x58] sm:$0xff] %vm569, %v516
  %582 = vst.msk [vmem:[%s2 + $0x60] sm:$0xff] %vm569, %v517
  %583 = vst.msk [vmem:[%s2 + $0x68] sm:$0xff] %vm569, %v518
  %584 = vst.msk [vmem:[%s2 + $0x70] sm:$0xff] %vm569, %v519
  %585 = vst.msk [vmem:[%s2 + $0x78] sm:$0xff] %vm569, %v520
  %586 = vst.msk [vmem:[%s2 + $0x80] sm:$0xff] %vm569, %v521
  %587 = vst.msk [vmem:[%s2 + $0x88] sm:$0xff] %vm569, %v522
  %588 = vst.msk [vmem:[%s2 + $0x90] sm:$0xff] %vm569, %v523
  %589 = vst.msk [vmem:[%s2 + $0x98] sm:$0xff] %vm569, %v524
  %590 = vst.msk [vmem:[%s2 + $0xa0] sm:$0xff] %vm569, %v525
  %591 = vst.msk [vmem:[%s2 + $0xa8] sm:$0xff] %vm569, %v526
  %592 = vst.msk [vmem:[%s2 + $0xb0] sm:$0xff] %vm569, %v527
  %593 = vst.msk [vmem:[%s2 + $0xb8] sm:$0xff] %vm569, %v528
  %594 = vst.msk [vmem:[%s2 + $0xc0] sm:$0xff] %vm569, %v529
  %595 = vst.msk [vmem:[%s2 + $0xc8] sm:$0xff] %vm569, %v530
  %596 = vst.msk [vmem:[%s2 + $0xd0] sm:$0xff] %vm569, %v531
  %597 = vst.msk [vmem:[%s2 + $0xd8] sm:$0xff] %vm569, %v532
  %598 = vst.msk [vmem:[%s2 + $0xe0] sm:$0xff] %vm569, %v533
  %599 = vst.msk [vmem:[%s2 + $0xe8] sm:$0xff] %vm569, %v534
  %600 = vst.msk [vmem:[%s2 + $0xf0] sm:$0xff] %vm569, %v535
  %601 = vst.msk [vmem:[%s2 + $0xf8] sm:$0xff] %vm569, %v536
  %602 = vst.msk [vmem:[%s2 + $0x100] sm:$0xff] %vm569, %v537
  %603 = vst.msk [vmem:[%s2 + $0x108] sm:$0xff] %vm569, %v538
  %604 = vst.msk [vmem:[%s2 + $0x110] sm:$0xff] %vm569, %v539
  %605 = vst.msk [vmem:[%s2 + $0x118] sm:$0xff] %vm569, %v540
  %606 = vst.msk [vmem:[%s2 + $0x120] sm:$0xff] %vm569, %v541
  %607 = vst.msk [vmem:[%s2 + $0x128] sm:$0xff] %vm569, %v542
  %608 = vst.msk [vmem:[%s2 + $0x130] sm:$0xff] %vm569, %v543
  %609 = vst.msk [vmem:[%s2 + $0x138] sm:$0xff] %vm569, %v544
  %610 = vst.msk [vmem:[%s2 + $0x140] sm:$0xff] %vm569, %v545
  %611 = vst.msk [vmem:[%s2 + $0x148] sm:$0xff] %vm569, %v546
  %612 = vst.msk [vmem:[%s2 + $0x150] sm:$0xff] %vm569, %v547
  %613 = vst.msk [vmem:[%s2 + $0x158] sm:$0xff] %vm569, %v548
  %614 = vst.msk [vmem:[%s2 + $0x160] sm:$0xff] %vm569, %v549
  %615 = vst.msk [vmem:[%s2 + $0x168] sm:$0xff] %vm569, %v550
  %616 = vst.msk [vmem:[%s2 + $0x170] sm:$0xff] %vm569, %v551
  %617 = vst.msk [vmem:[%s2 + $0x178] sm:$0xff] %vm569, %v552
  %618 = vst.msk [vmem:[%s2 + $0x180] sm:$0xff] %vm569, %v553
  %619 = vst.msk [vmem:[%s2 + $0x188] sm:$0xff] %vm569, %v554
  %620 = vst.msk [vmem:[%s2 + $0x190] sm:$0xff] %vm569, %v555
  %621 = vst.msk [vmem:[%s2 + $0x198] sm:$0xff] %vm569, %v556
  %622 = vst.msk [vmem:[%s2 + $0x1a0] sm:$0xff] %vm569, %v557
  %623 = vst.msk [vmem:[%s2 + $0x1a8] sm:$0xff] %vm569, %v558
  %624 = vst.msk [vmem:[%s2 + $0x1b0] sm:$0xff] %vm569, %v559
  %625 = vst.msk [vmem:[%s2 + $0x1b8] sm:$0xff] %vm569, %v560
  %626 = vst.msk [vmem:[%s2 + $0x1c0] sm:$0xff] %vm569, %v561
  %627 = vst.msk [vmem:[%s2 + $0x1c8] sm:$0xff] %vm569, %v562
  %628 = vst.msk [vmem:[%s2 + $0x1d0] sm:$0xff] %vm569, %v563
  %629 = vst.msk [vmem:[%s2 + $0x1d8] sm:$0xff] %vm569, %v564
  %630 = vst.msk [vmem:[%s2 + $0x1e0] sm:$0xff] %vm569, %v565
  %631 = vst.msk [vmem:[%s2 + $0x1e8] sm:$0xff] %vm569, %v566
  %632 = vst.msk [vmem:[%s2 + $0x1f0] sm:$0xff] %vm569, %v567
  %633 = vst.msk [vmem:[%s2 + $0x1f8] sm:$0xff] %vm569, %v568
  // Predicated region
  $region10: #{lazy_quantize_wrapper_conv2d.5} parent=0 // pred_check
    _
  $region11: #{lazy_quantize_wrapper_conv2d.5} parent=0 // pred_check_branch
    %635 = sbr.rel (0) target = $region13
  $region12: #{lazy_quantize_wrapper_conv2d.5} parent=0 // pred_region
    _
  $region13: #{lazy_quantize_wrapper_conv2d.5} parent=0 // pred_fallthru
    _
  // Predicated region
  $region14: #{lazy_quantize_wrapper_conv2d.5} parent=0 // pred_check
    _
  $region15: #{lazy_quantize_wrapper_conv2d.5} parent=0 // pred_check_branch
    %637 = sbr.rel (0) target = $region17
  $region16: #{lazy_quantize_wrapper_conv2d.5} parent=0 // pred_region
    _
  $region17: #{lazy_quantize_wrapper_conv2d.5} parent=0 // pred_fallthru
    _

// kernel: lazy_quantize_wrapper_conv2d.4
$region0: #{lazy_quantize_wrapper_conv2d.4}
  #allocation0 [shape = 'u32[]', space=smem, size = 0x4, offset = 0x4, fixed_abs, tag = 'smem constant byte address 0x4 - core index']
  #allocation1 [shape = 'u32[144,128]{1,0:T(1,128)}', space=vmem, size = 0x12000, scoped, tag = 'internal scratch']
  #allocation2 [shape = 'f32[1,1]{1,0:T(1,128)S(1)}', space=vmem, size = 0x200, scoped, tag = 'scoped memory for lazy_quantize_wrapper_conv2d.4']
  %s0 = inlined_call_operand.vmem [shape: bf16[512,128], index: 0, kind: input, shape index: {}]
  %s1 = inlined_call_operand.vmem [shape: bf16[128,128], index: 1, kind: input, shape index: {}]
  %s2 = inlined_call_operand.<no memory space> [shape: f32[1,1], index: 2, kind: input, shape index: {}]
  %s3 = inlined_call_operand.vmem [shape: f32[1,128], index: 3, kind: input, shape index: {}]
  %s4 = inlined_call_operand.vmem [shape: f32[512,128], index: 4, kind: output, shape index: {0}]
  %s5 = inlined_call_operand.vmem [shape: f32[1,2,128], index: 5, kind: output, shape index: {1}]
  %6 = xla_tuple %s4, %s5
  %s7 = sld [smem:[#allocation0]]
  $region34: #{lazy_quantize_wrapper_conv2d.4} parent=0
    _
  %s9 = ssub.s32 1, %s7
  %s10 = scalar_select 0, %s9, %s7
  %v11 = vstv %s2
  %12 = vst [vmem:[#allocation2] sm:$0x1] %v11
  // Predicated region
  $region2: #{lazy_quantize_wrapper_conv2d.4} parent=0 // pred_check
    _
  $region3: #{lazy_quantize_wrapper_conv2d.4} parent=0 // pred_check_branch
    %14 = sbr.rel (0) target = $region5
  $region4: #{lazy_quantize_wrapper_conv2d.4} parent=0 // pred_region
    _
  $region5: #{lazy_quantize_wrapper_conv2d.4} parent=0 // pred_fallthru
    _
  // Predicated region
  $region6: #{lazy_quantize_wrapper_conv2d.4} parent=0 // pred_check
    _
  $region7: #{lazy_quantize_wrapper_conv2d.4} parent=0 // pred_check_branch
    %16 = sbr.rel (0) target = $region9
  $region8: #{lazy_quantize_wrapper_conv2d.4} parent=0 // pred_region
    _
  $region9: #{lazy_quantize_wrapper_conv2d.4} parent=0 // pred_fallthru
    _
  // Predicated region
  $region10: #{lazy_quantize_wrapper_conv2d.4} parent=0 // pred_check
    _
  $region11: #{lazy_quantize_wrapper_conv2d.4} parent=0 // pred_check_branch
    %18 = sbr.rel (0) target = $region13
  $region12: #{lazy_quantize_wrapper_conv2d.4} parent=0 // pred_region
    _
  $region13: #{lazy_quantize_wrapper_conv2d.4} parent=0 // pred_fallthru
    _
  // Predicated region
  $region14: #{lazy_quantize_wrapper_conv2d.4} parent=0 // pred_check
    _
  $region15: #{lazy_quantize_wrapper_conv2d.4} parent=0 // pred_check_branch
    %20 = sbr.rel (0) target = $region17
  $region16: #{lazy_quantize_wrapper_conv2d.4} parent=0 // pred_region
    _
  $region17: #{lazy_quantize_wrapper_conv2d.4} parent=0 // pred_fallthru
    _
  %v22 = vld [vmem:[%s0] sm:$0xf]
  %v23 = vld [vmem:[%s0 + $0x4] sm:$0xf]
  %v24 = vld [vmem:[%s0 + $0x8] sm:$0xf]
  %v25 = vld [vmem:[%s0 + $0xc] sm:$0xf]
  %v26 = vld [vmem:[%s0 + $0x10] sm:$0xf]
  %v27 = vld [vmem:[%s0 + $0x14] sm:$0xf]
  %v28 = vld [vmem:[%s0 + $0x18] sm:$0xf]
  %v29 = vld [vmem:[%s0 + $0x1c] sm:$0xf]
  %v30 = vld [vmem:[%s0 + $0x20] sm:$0xf]
  %v31 = vld [vmem:[%s0 + $0x24] sm:$0xf]
  %v32 = vld [vmem:[%s0 + $0x28] sm:$0xf]
  %v33 = vld [vmem:[%s0 + $0x2c] sm:$0xf]
  %v34 = vld [vmem:[%s0 + $0x30] sm:$0xf]
  %v35 = vld [vmem:[%s0 + $0x34] sm:$0xf]
  %v36 = vld [vmem:[%s0 + $0x38] sm:$0xf]
  %v37 = vld [vmem:[%s0 + $0x3c] sm:$0xf]
  %v38 = vld [vmem:[%s0 + $0x40] sm:$0xf]
  %v39 = vld [vmem:[%s0 + $0x44] sm:$0xf]
  %v40 = vld [vmem:[%s0 + $0x48] sm:$0xf]
  %v41 = vld [vmem:[%s0 + $0x4c] sm:$0xf]
  %v42 = vld [vmem:[%s0 + $0x50] sm:$0xf]
  %v43 = vld [vmem:[%s0 + $0x54] sm:$0xf]
  %v44 = vld [vmem:[%s0 + $0x58] sm:$0xf]
  %v45 = vld [vmem:[%s0 + $0x5c] sm:$0xf]
  %v46 = vld [vmem:[%s0 + $0x60] sm:$0xf]
  %v47 = vld [vmem:[%s0 + $0x64] sm:$0xf]
  %v48 = vld [vmem:[%s0 + $0x68] sm:$0xf]
  %v49 = vld [vmem:[%s0 + $0x6c] sm:$0xf]
  %v50 = vld [vmem:[%s0 + $0x70] sm:$0xf]
  %v51 = vld [vmem:[%s0 + $0x74] sm:$0xf]
  %v52 = vld [vmem:[%s0 + $0x78] sm:$0xf]
  %v53 = vld [vmem:[%s0 + $0x7c] sm:$0xf]
  %v54 = vld [vmem:[%s0 + $0x80] sm:$0xf]
  %v55 = vld [vmem:[%s0 + $0x84] sm:$0xf]
  %v56 = vld [vmem:[%s0 + $0x88] sm:$0xf]
  %v57 = vld [vmem:[%s0 + $0x8c] sm:$0xf]
  %v58 = vld [vmem:[%s0 + $0x90] sm:$0xf]
  %v59 = vld [vmem:[%s0 + $0x94] sm:$0xf]
  %v60 = vld [vmem:[%s0 + $0x98] sm:$0xf]
  %v61 = vld [vmem:[%s0 + $0x9c] sm:$0xf]
  %v62 = vld [vmem:[%s0 + $0xa0] sm:$0xf]
  %v63 = vld [vmem:[%s0 + $0xa4] sm:$0xf]
  %v64 = vld [vmem:[%s0 + $0xa8] sm:$0xf]
  %v65 = vld [vmem:[%s0 + $0xac] sm:$0xf]
  %v66 = vld [vmem:[%s0 + $0xb0] sm:$0xf]
  %v67 = vld [vmem:[%s0 + $0xb4] sm:$0xf]
  %v68 = vld [vmem:[%s0 + $0xb8] sm:$0xf]
  %v69 = vld [vmem:[%s0 + $0xbc] sm:$0xf]
  %v70 = vld [vmem:[%s0 + $0xc0] sm:$0xf]
  %v71 = vld [vmem:[%s0 + $0xc4] sm:$0xf]
  %v72 = vld [vmem:[%s0 + $0xc8] sm:$0xf]
  %v73 = vld [vmem:[%s0 + $0xcc] sm:$0xf]
  %v74 = vld [vmem:[%s0 + $0xd0] sm:$0xf]
  %v75 = vld [vmem:[%s0 + $0xd4] sm:$0xf]
  %v76 = vld [vmem:[%s0 + $0xd8] sm:$0xf]
  %v77 = vld [vmem:[%s0 + $0xdc] sm:$0xf]
  %v78 = vld [vmem:[%s0 + $0xe0] sm:$0xf]
  %v79 = vld [vmem:[%s0 + $0xe4] sm:$0xf]
  %v80 = vld [vmem:[%s0 + $0xe8] sm:$0xf]
  %v81 = vld [vmem:[%s0 + $0xec] sm:$0xf]
  %v82 = vld [vmem:[%s0 + $0xf0] sm:$0xf]
  %v83 = vld [vmem:[%s0 + $0xf4] sm:$0xf]
  %v84 = vld [vmem:[%s0 + $0xf8] sm:$0xf]
  %v85 = vld [vmem:[%s0 + $0xfc] sm:$0xf]
  %v86 = vld [vmem:[%s1] sm:$0xf]
  %v87 = vld [vmem:[%s1 + $0x4] sm:$0xf]
  %v88 = vld [vmem:[%s1 + $0x8] sm:$0xf]
  %v89 = vld [vmem:[%s1 + $0xc] sm:$0xf]
  %v90 = vld [vmem:[%s1 + $0x10] sm:$0xf]
  %v91 = vld [vmem:[%s1 + $0x14] sm:$0xf]
  %v92 = vld [vmem:[%s1 + $0x18] sm:$0xf]
  %v93 = vld [vmem:[%s1 + $0x1c] sm:$0xf]
  %v94 = vld [vmem:[%s1 + $0x20] sm:$0xf]
  %v95 = vld [vmem:[%s1 + $0x24] sm:$0xf]
  %v96 = vld [vmem:[%s1 + $0x28] sm:$0xf]
  %v97 = vld [vmem:[%s1 + $0x2c] sm:$0xf]
  %v98 = vld [vmem:[%s1 + $0x30] sm:$0xf]
  %v99 = vld [vmem:[%s1 + $0x34] sm:$0xf]
  %v100 = vld [vmem:[%s1 + $0x38] sm:$0xf]
  %v101 = vld [vmem:[%s1 + $0x3c] sm:$0xf]
  %v166 = vunpack.c.l.b16 %v22
  %v167 = vunpack.c.l.b16 %v23
  %v168 = vunpack.c.l.b16 %v24
  %v169 = vunpack.c.l.b16 %v25
  %v170 = vunpack.c.l.b16 %v26
  %v171 = vunpack.c.l.b16 %v27
  %v172 = vunpack.c.l.b16 %v28
  %v173 = vunpack.c.l.b16 %v29
  %v174 = vunpack.c.l.b16 %v30
  %v175 = vunpack.c.l.b16 %v31
  %v176 = vunpack.c.l.b16 %v32
  %v177 = vunpack.c.l.b16 %v33
  %v178 = vunpack.c.l.b16 %v34
  %v179 = vunpack.c.l.b16 %v35
  %v180 = vunpack.c.l.b16 %v36
  %v181 = vunpack.c.l.b16 %v37
  %v182 = vunpack.c.l.b16 %v38
  %v183 = vunpack.c.l.b16 %v39
  %v184 = vunpack.c.l.b16 %v40
  %v185 = vunpack.c.l.b16 %v41
  %v186 = vunpack.c.l.b16 %v42
  %v187 = vunpack.c.l.b16 %v43
  %v188 = vunpack.c.l.b16 %v44
  %v189 = vunpack.c.l.b16 %v45
  %v190 = vunpack.c.l.b16 %v46
  %v191 = vunpack.c.l.b16 %v47
  %v192 = vunpack.c.l.b16 %v48
  %v193 = vunpack.c.l.b16 %v49
  %v194 = vunpack.c.l.b16 %v50
  %v195 = vunpack.c.l.b16 %v51
  %v196 = vunpack.c.l.b16 %v52
  %v197 = vunpack.c.l.b16 %v53
  %v198 = vunpack.c.l.b16 %v54
  %v199 = vunpack.c.l.b16 %v55
  %v200 = vunpack.c.l.b16 %v56
  %v201 = vunpack.c.l.b16 %v57
  %v202 = vunpack.c.l.b16 %v58
  %v203 = vunpack.c.l.b16 %v59
  %v204 = vunpack.c.l.b16 %v60
  %v205 = vunpack.c.l.b16 %v61
  %v206 = vunpack.c.l.b16 %v62
  %v207 = vunpack.c.l.b16 %v63
  %v208 = vunpack.c.l.b16 %v64
  %v209 = vunpack.c.l.b16 %v65
  %v210 = vunpack.c.l.b16 %v66
  %v211 = vunpack.c.l.b16 %v67
  %v212 = vunpack.c.l.b16 %v68
  %v213 = vunpack.c.l.b16 %v69
  %v214 = vunpack.c.l.b16 %v70
  %v215 = vunpack.c.l.b16 %v71
  %v216 = vunpack.c.l.b16 %v72
  %v217 = vunpack.c.l.b16 %v73
  %v218 = vunpack.c.l.b16 %v74
  %v219 = vunpack.c.l.b16 %v75
  %v220 = vunpack.c.l.b16 %v76
  %v221 = vunpack.c.l.b16 %v77
  %v222 = vunpack.c.l.b16 %v78
  %v223 = vunpack.c.l.b16 %v79
  %v224 = vunpack.c.l.b16 %v80
  %v225 = vunpack.c.l.b16 %v81
  %v226 = vunpack.c.l.b16 %v82
  %v227 = vunpack.c.l.b16 %v83
  %v228 = vunpack.c.l.b16 %v84
  %v229 = vunpack.c.l.b16 %v85
  %v230 = vpack.c.b16 %v167, %v166
  %v231 = vpack.c.b16 %v169, %v168
  %v232 = vpack.c.b16 %v171, %v170
  %v233 = vpack.c.b16 %v173, %v172
  %v234 = vpack.c.b16 %v175, %v174
  %v235 = vpack.c.b16 %v177, %v176
  %v236 = vpack.c.b16 %v179, %v178
  %v237 = vpack.c.b16 %v181, %v180
  %v238 = vpack.c.b16 %v183, %v182
  %v239 = vpack.c.b16 %v185, %v184
  %v240 = vpack.c.b16 %v187, %v186
  %v241 = vpack.c.b16 %v189, %v188
  %v242 = vpack.c.b16 %v191, %v190
  %v243 = vpack.c.b16 %v193, %v192
  %v244 = vpack.c.b16 %v195, %v194
  %v245 = vpack.c.b16 %v197, %v196
  %v246 = vpack.c.b16 %v199, %v198
  %v247 = vpack.c.b16 %v201, %v200
  %v248 = vpack.c.b16 %v203, %v202
  %v249 = vpack.c.b16 %v205, %v204
  %v250 = vpack.c.b16 %v207, %v206
  %v251 = vpack.c.b16 %v209, %v208
  %v252 = vpack.c.b16 %v211, %v210
  %v253 = vpack.c.b16 %v213, %v212
  %v254 = vpack.c.b16 %v215, %v214
  %v255 = vpack.c.b16 %v217, %v216
  %v256 = vpack.c.b16 %v219, %v218
  %v257 = vpack.c.b16 %v221, %v220
  %v258 = vpack.c.b16 %v223, %v222
  %v259 = vpack.c.b16 %v225, %v224
  %v260 = vpack.c.b16 %v227, %v226
  %v261 = vpack.c.b16 %v229, %v228
  %v310 = vunpack.c.l.b16 %v86
  %v311 = vunpack.c.l.b16 %v87
  %v312 = vunpack.c.l.b16 %v88
  %v313 = vunpack.c.l.b16 %v89
  %v314 = vunpack.c.l.b16 %v90
  %v315 = vunpack.c.l.b16 %v91
  %v316 = vunpack.c.l.b16 %v92
  %v317 = vunpack.c.l.b16 %v93
  %v318 = vunpack.c.l.b16 %v94
  %v319 = vunpack.c.l.b16 %v95
  %v320 = vunpack.c.l.b16 %v96
  %v321 = vunpack.c.l.b16 %v97
  %v322 = vunpack.c.l.b16 %v98
  %v323 = vunpack.c.l.b16 %v99
  %v324 = vunpack.c.l.b16 %v100
  %v325 = vunpack.c.l.b16 %v101
  %v326 = vpack.c.b16 %v311, %v310
  %v327 = vpack.c.b16 %v313, %v312
  %v328 = vpack.c.b16 %v315, %v314
  %v329 = vpack.c.b16 %v317, %v316
  %v330 = vpack.c.b16 %v319, %v318
  %v331 = vpack.c.b16 %v321, %v320
  %v332 = vpack.c.b16 %v323, %v322
  %v333 = vpack.c.b16 %v325, %v324
  %342 = vmatprep.subr.bf16.mxu0 0
  %343 = vmatpush1.bf16.msra.mxu0 %v326
  %344 = vmatprep.subr.bf16.mxu0 0
  %345 = vmatpush1.bf16.msra.mxu0 %v327
  %346 = vmatprep.subr.bf16.mxu0 0
  %347 = vmatpush1.bf16.msra.mxu0 %v328
  %348 = vmatprep.subr.bf16.mxu0 0
  %349 = vmatpush1.bf16.msra.mxu0 %v329
  %350 = vmatprep.subr.bf16.mxu0 0
  %351 = vmatpush1.bf16.msra.mxu0 %v330
  %352 = vmatprep.subr.bf16.mxu0 0
  %353 = vmatpush1.bf16.msra.mxu0 %v331
  %354 = vmatprep.subr.bf16.mxu0 0
  %355 = vmatpush1.bf16.msra.mxu0 %v332
  %356 = vmatprep.subr.bf16.mxu0 0
  %357 = vmatpush1.bf16.msra.mxu0 %v333
  %358 = vmatprep.subr.bf16.mxu0 0
  %359 = vmatpush1.bf16.msra.mxu0 0
  %360 = vmatprep.subr.bf16.mxu0 0
  %361 = vmatpush1.bf16.msra.mxu0 0
  %362 = vmatprep.subr.bf16.mxu0 0
  %363 = vmatpush1.bf16.msra.mxu0 0
  %364 = vmatprep.subr.bf16.mxu0 0
  %365 = vmatpush1.bf16.msra.mxu0 0
  %366 = vmatprep.subr.bf16.mxu0 0
  %367 = vmatpush1.bf16.msra.mxu0 0
  %368 = vmatprep.subr.bf16.mxu0 0
  %369 = vmatpush1.bf16.msra.mxu0 0
  %370 = vmatprep.subr.bf16.mxu0 0
  %371 = vmatpush1.bf16.msra.mxu0 0
  %372 = vmatprep.subr.bf16.mxu0 0
  %373 = vmatpush1.bf16.msra.mxu0 0
  %374 = vmatprep.mubr.bf16.mxu0 0
  %375 = vmatmul.mubr.bf16.gmra.mrb[0].mxu0 %v230
  %v376 = vpop.f32.mrb[0].mxu0
  %v377 = vadd.f32 0.0, %v376
  %v378 = vpop.f32.mrb[0].mxu0
  %v379 = vpop.f32.mrb[0].mxu0
  %v380 = vadd.f32 0.0, %v379
  %v381 = vpop.f32.mrb[0].mxu0
  %382 = vmatprep.mubr.bf16.mxu0 0
  %383 = vmatmul.mubr.bf16.gmra.mrb[0].mxu0 %v231
  %v384 = vpop.f32.mrb[0].mxu0
  %v385 = vadd.f32 0.0, %v384
  %v386 = vpop.f32.mrb[0].mxu0
  %v387 = vpop.f32.mrb[0].mxu0
  %v388 = vadd.f32 0.0, %v387
  %v389 = vpop.f32.mrb[0].mxu0
  %390 = vmatprep.mubr.bf16.mxu0 0
  %391 = vmatmul.mubr.bf16.gmra.mrb[0].mxu0 %v232
  %v392 = vpop.f32.mrb[0].mxu0
  %v393 = vadd.f32 0.0, %v392
  %v394 = vpop.f32.mrb[0].mxu0
  %v395 = vpop.f32.mrb[0].mxu0
  %v396 = vadd.f32 0.0, %v395
  %v397 = vpop.f32.mrb[0].mxu0
  %398 = vmatprep.mubr.bf16.mxu0 0
  %399 = vmatmul.mubr.bf16.gmra.mrb[0].mxu0 %v233
  %v400 = vpop.f32.mrb[0].mxu0
  %v401 = vadd.f32 0.0, %v400
  %v402 = vpop.f32.mrb[0].mxu0
  %v403 = vpop.f32.mrb[0].mxu0
  %v404 = vadd.f32 0.0, %v403
  %v405 = vpop.f32.mrb[0].mxu0
  %406 = vmatprep.mubr.bf16.mxu0 0
  %407 = vmatmul.mubr.bf16.gmra.mrb[0].mxu0 %v234
  %v408 = vpop.f32.mrb[0].mxu0
  %v409 = vadd.f32 0.0, %v408
  %v410 = vpop.f32.mrb[0].mxu0
  %v411 = vpop.f32.mrb[0].mxu0
  %v412 = vadd.f32 0.0, %v411
  %v413 = vpop.f32.mrb[0].mxu0
  %414 = vmatprep.mubr.bf16.mxu0 0
  %415 = vmatmul.mubr.bf16.gmra.mrb[0].mxu0 %v235
  %v416 = vpop.f32.mrb[0].mxu0
  %v417 = vadd.f32 0.0, %v416
  %v418 = vpop.f32.mrb[0].mxu0
  %v419 = vpop.f32.mrb[0].mxu0
  %v420 = vadd.f32 0.0, %v419
  %v421 = vpop.f32.mrb[0].mxu0
  %422 = vmatprep.mubr.bf16.mxu0 0
  %423 = vmatmul.mubr.bf16.gmra.mrb[0].mxu0 %v236
  %v424 = vpop.f32.mrb[0].mxu0
  %v425 = vadd.f32 0.0, %v424
  %v426 = vpop.f32.mrb[0].mxu0
  %v427 = vpop.f32.mrb[0].mxu0
  %v428 = vadd.f32 0.0, %v427
  %v429 = vpop.f32.mrb[0].mxu0
  %430 = vmatprep.mubr.bf16.mxu0 0
  %431 = vmatmul.mubr.bf16.gmra.mrb[0].mxu0 %v237
  %v432 = vpop.f32.mrb[0].mxu0
  %v433 = vadd.f32 0.0, %v432
  %v434 = vpop.f32.mrb[0].mxu0
  %v435 = vpop.f32.mrb[0].mxu0
  %v436 = vadd.f32 0.0, %v435
  %v437 = vpop.f32.mrb[0].mxu0
  %438 = vmatprep.mubr.bf16.mxu0 0
  %439 = vmatmul.mubr.bf16.gmra.mrb[0].mxu0 %v238
  %v440 = vpop.f32.mrb[0].mxu0
  %v441 = vadd.f32 0.0, %v440
  %v442 = vpop.f32.mrb[0].mxu0
  %v443 = vpop.f32.mrb[0].mxu0
  %v444 = vadd.f32 0.0, %v443
  %v445 = vpop.f32.mrb[0].mxu0
  %446 = vmatprep.mubr.bf16.mxu0 0
  %447 = vmatmul.mubr.bf16.gmra.mrb[0].mxu0 %v239
  %v448 = vpop.f32.mrb[0].mxu0
  %v449 = vadd.f32 0.0, %v448
  %v450 = vpop.f32.mrb[0].mxu0
  %v451 = vpop.f32.mrb[0].mxu0
  %v452 = vadd.f32 0.0, %v451
  %v453 = vpop.f32.mrb[0].mxu0
  %454 = vmatprep.mubr.bf16.mxu0 0
  %455 = vmatmul.mubr.bf16.gmra.mrb[0].mxu0 %v240
  %v456 = vpop.f32.mrb[0].mxu0
  %v457 = vadd.f32 0.0, %v456
  %v458 = vpop.f32.mrb[0].mxu0
  %v459 = vpop.f32.mrb[0].mxu0
  %v460 = vadd.f32 0.0, %v459
  %v461 = vpop.f32.mrb[0].mxu0
  %462 = vmatprep.mubr.bf16.mxu0 0
  %463 = vmatmul.mubr.bf16.gmra.mrb[0].mxu0 %v241
  %v464 = vpop.f32.mrb[0].mxu0
  %v465 = vadd.f32 0.0, %v464
  %v466 = vpop.f32.mrb[0].mxu0
  %v467 = vpop.f32.mrb[0].mxu0
  %v468 = vadd.f32 0.0, %v467
  %v469 = vpop.f32.mrb[0].mxu0
  %470 = vmatprep.mubr.bf16.mxu0 0
  %471 = vmatmul.mubr.bf16.gmra.mrb[0].mxu0 %v242
  %v472 = vpop.f32.mrb[0].mxu0
  %v473 = vadd.f32 0.0, %v472
  %v474 = vpop.f32.mrb[0].mxu0
  %v475 = vpop.f32.mrb[0].mxu0
  %v476 = vadd.f32 0.0, %v475
  %v477 = vpop.f32.mrb[0].mxu0
  %478 = vmatprep.mubr.bf16.mxu0 0
  %479 = vmatmul.mubr.bf16.gmra.mrb[0].mxu0 %v243
  %v480 = vpop.f32.mrb[0].mxu0
  %v481 = vadd.f32 0.0, %v480
  %v482 = vpop.f32.mrb[0].mxu0
  %v483 = vpop.f32.mrb[0].mxu0
  %v484 = vadd.f32 0.0, %v483
  %v485 = vpop.f32.mrb[0].mxu0
  %486 = vmatprep.mubr.bf16.mxu0 0
  %487 = vmatmul.mubr.bf16.gmra.mrb[0].mxu0 %v244
  %v488 = vpop.f32.mrb[0].mxu0
  %v489 = vadd.f32 0.0, %v488
  %v490 = vpop.f32.mrb[0].mxu0
  %v491 = vpop.f32.mrb[0].mxu0
  %v492 = vadd.f32 0.0, %v491
  %v493 = vpop.f32.mrb[0].mxu0
  %494 = vmatprep.mubr.bf16.mxu0 0
  %495 = vmatmul.mubr.bf16.gmra.mrb[0].mxu0 %v245
  %v496 = vpop.f32.mrb[0].mxu0
  %v497 = vadd.f32 0.0, %v496
  %v498 = vpop.f32.mrb[0].mxu0
  %v499 = vpop.f32.mrb[0].mxu0
  %v500 = vadd.f32 0.0, %v499
  %v501 = vpop.f32.mrb[0].mxu0
  %502 = vmatprep.mubr.bf16.mxu0 0
  %503 = vmatmul.mubr.bf16.gmra.mrb[0].mxu0 %v246
  %v504 = vpop.f32.mrb[0].mxu0
  %v505 = vadd.f32 0.0, %v504
  %v506 = vpop.f32.mrb[0].mxu0
  %v507 = vpop.f32.mrb[0].mxu0
  %v508 = vadd.f32 0.0, %v507
  %v509 = vpop.f32.mrb[0].mxu0
  %510 = vmatprep.mubr.bf16.mxu0 0
  %511 = vmatmul.mubr.bf16.gmra.mrb[0].mxu0 %v247
  %v512 = vpop.f32.mrb[0].mxu0
  %v513 = vadd.f32 0.0, %v512
  %v514 = vpop.f32.mrb[0].mxu0
  %v515 = vpop.f32.mrb[0].mxu0
  %v516 = vadd.f32 0.0, %v515
  %v517 = vpop.f32.mrb[0].mxu0
  %518 = vmatprep.mubr.bf16.mxu0 0
  %519 = vmatmul.mubr.bf16.gmra.mrb[0].mxu0 %v248
  %v520 = vpop.f32.mrb[0].mxu0
  %v521 = vadd.f32 0.0, %v520
  %v522 = vpop.f32.mrb[0].mxu0
  %v523 = vpop.f32.mrb[0].mxu0
  %v524 = vadd.f32 0.0, %v523
  %v525 = vpop.f32.mrb[0].mxu0
  %526 = vmatprep.mubr.bf16.mxu0 0
  %527 = vmatmul.mubr.bf16.gmra.mrb[0].mxu0 %v249
  %v528 = vpop.f32.mrb[0].mxu0
  %v529 = vadd.f32 0.0, %v528
  %v530 = vpop.f32.mrb[0].mxu0
  %v531 = vpop.f32.mrb[0].mxu0
  %v532 = vadd.f32 0.0, %v531
  %v533 = vpop.f32.mrb[0].mxu0
  %534 = vmatprep.mubr.bf16.mxu0 0
  %535 = vmatmul.mubr.bf16.gmra.mrb[0].mxu0 %v250
  %v536 = vpop.f32.mrb[0].mxu0
  %v537 = vadd.f32 0.0, %v536
  %v538 = vpop.f32.mrb[0].mxu0
  %v539 = vpop.f32.mrb[0].mxu0
  %v540 = vadd.f32 0.0, %v539
  %v541 = vpop.f32.mrb[0].mxu0
  %542 = vmatprep.mubr.bf16.mxu0 0
  %543 = vmatmul.mubr.bf16.gmra.mrb[0].mxu0 %v251
  %v544 = vpop.f32.mrb[0].mxu0
  %v545 = vadd.f32 0.0, %v544
  %v546 = vpop.f32.mrb[0].mxu0
  %v547 = vpop.f32.mrb[0].mxu0
  %v548 = vadd.f32 0.0, %v547
  %v549 = vpop.f32.mrb[0].mxu0
  %550 = vmatprep.mubr.bf16.mxu0 0
  %551 = vmatmul.mubr.bf16.gmra.mrb[0].mxu0 %v252
  %v552 = vpop.f32.mrb[0].mxu0
  %v553 = vadd.f32 0.0, %v552
  %v554 = vpop.f32.mrb[0].mxu0
  %v555 = vpop.f32.mrb[0].mxu0
  %v556 = vadd.f32 0.0, %v555
  %v557 = vpop.f32.mrb[0].mxu0
  %558 = vmatprep.mubr.bf16.mxu0 0
  %559 = vmatmul.mubr.bf16.gmra.mrb[0].mxu0 %v253
  %v560 = vpop.f32.mrb[0].mxu0
  %v561 = vadd.f32 0.0, %v560
  %v562 = vpop.f32.mrb[0].mxu0
  %v563 = vpop.f32.mrb[0].mxu0
  %v564 = vadd.f32 0.0, %v563
  %v565 = vpop.f32.mrb[0].mxu0
  %566 = vmatprep.mubr.bf16.mxu0 0
  %567 = vmatmul.mubr.bf16.gmra.mrb[0].mxu0 %v254
  %v568 = vpop.f32.mrb[0].mxu0
  %v569 = vadd.f32 0.0, %v568
  %v570 = vpop.f32.mrb[0].mxu0
  %v571 = vpop.f32.mrb[0].mxu0
  %v572 = vadd.f32 0.0, %v571
  %v573 = vpop.f32.mrb[0].mxu0
  %574 = vmatprep.mubr.bf16.mxu0 0
  %575 = vmatmul.mubr.bf16.gmra.mrb[0].mxu0 %v255
  %v576 = vpop.f32.mrb[0].mxu0
  %v577 = vadd.f32 0.0, %v576
  %v578 = vpop.f32.mrb[0].mxu0
  %v579 = vpop.f32.mrb[0].mxu0
  %v580 = vadd.f32 0.0, %v579
  %v581 = vpop.f32.mrb[0].mxu0
  %582 = vmatprep.mubr.bf16.mxu0 0
  %583 = vmatmul.mubr.bf16.gmra.mrb[0].mxu0 %v256
  %v584 = vpop.f32.mrb[0].mxu0
  %v585 = vadd.f32 0.0, %v584
  %v586 = vpop.f32.mrb[0].mxu0
  %v587 = vpop.f32.mrb[0].mxu0
  %v588 = vadd.f32 0.0, %v587
  %v589 = vpop.f32.mrb[0].mxu0
  %590 = vmatprep.mubr.bf16.mxu0 0
  %591 = vmatmul.mubr.bf16.gmra.mrb[0].mxu0 %v257
  %v592 = vpop.f32.mrb[0].mxu0
  %v593 = vadd.f32 0.0, %v592
  %v594 = vpop.f32.mrb[0].mxu0
  %v595 = vpop.f32.mrb[0].mxu0
  %v596 = vadd.f32 0.0, %v595
  %v597 = vpop.f32.mrb[0].mxu0
  %598 = vmatprep.mubr.bf16.mxu0 0
  %599 = vmatmul.mubr.bf16.gmra.mrb[0].mxu0 %v258
  %v600 = vpop.f32.mrb[0].mxu0
  %v601 = vadd.f32 0.0, %v600
  %v602 = vpop.f32.mrb[0].mxu0
  %v603 = vpop.f32.mrb[0].mxu0
  %v604 = vadd.f32 0.0, %v603
  %v605 = vpop.f32.mrb[0].mxu0
  %606 = vmatprep.mubr.bf16.mxu0 0
  %607 = vmatmul.mubr.bf16.gmra.mrb[0].mxu0 %v259
  %v608 = vpop.f32.mrb[0].mxu0
  %v609 = vadd.f32 0.0, %v608
  %v610 = vpop.f32.mrb[0].mxu0
  %v611 = vpop.f32.mrb[0].mxu0
  %v612 = vadd.f32 0.0, %v611
  %v613 = vpop.f32.mrb[0].mxu0
  %614 = vmatprep.mubr.bf16.mxu0 0
  %615 = vmatmul.mubr.bf16.gmra.mrb[0].mxu0 %v260
  %v616 = vpop.f32.mrb[0].mxu0
  %v617 = vadd.f32 0.0, %v616
  %v618 = vpop.f32.mrb[0].mxu0
  %v619 = vpop.f32.mrb[0].mxu0
  %v620 = vadd.f32 0.0, %v619
  %v621 = vpop.f32.mrb[0].mxu0
  %622 = vmatprep.mubr.bf16.mxu0 0
  %623 = vmatmul.mubr.bf16.gmra.mrb[0].mxu0 %v261
  %v624 = vpop.f32.mrb[0].mxu0
  %v625 = vadd.f32 0.0, %v624
  %v626 = vpop.f32.mrb[0].mxu0
  %v627 = vpop.f32.mrb[0].mxu0
  %v628 = vadd.f32 0.0, %v627
  %v629 = vpop.f32.mrb[0].mxu0
  %630 = vdwg.mxu0
  %v631 = vld [vmem:[#allocation2] sm:$0x1]
  %v633 = vlaneseq
  %v634 = vshrl.u32 %v633, 7
  %v635 = vsub.s32 0, %v634
  %v636 = vrot.slane %v631, %v635
  %637 = vset.pattern.permute.xlu0 0
  %638 = vperm.xlu0 %637, %v636
  %v639 = vpop.permute.xlu0 %638
  %v641 = vmul.f32 %v377, %v639
  %v642 = vmul.f32 %v380, %v639
  %v643 = vmul.f32 %v385, %v639
  %v644 = vmul.f32 %v388, %v639
  %v645 = vmul.f32 %v393, %v639
  %v646 = vmul.f32 %v396, %v639
  %v647 = vmul.f32 %v401, %v639
  %v648 = vmul.f32 %v404, %v639
  %v649 = vmul.f32 %v409, %v639
  %v650 = vmul.f32 %v412, %v639
  %v651 = vmul.f32 %v417, %v639
  %v652 = vmul.f32 %v420, %v639
  %v653 = vmul.f32 %v425, %v639
  %v654 = vmul.f32 %v428, %v639
  %v655 = vmul.f32 %v433, %v639
  %v656 = vmul.f32 %v436, %v639
  %v657 = vmul.f32 %v441, %v639
  %v658 = vmul.f32 %v444, %v639
  %v659 = vmul.f32 %v449, %v639
  %v660 = vmul.f32 %v452, %v639
  %v661 = vmul.f32 %v457, %v639
  %v662 = vmul.f32 %v460, %v639
  %v663 = vmul.f32 %v465, %v639
  %v664 = vmul.f32 %v468, %v639
  %v665 = vmul.f32 %v473, %v639
  %v666 = vmul.f32 %v476, %v639
  %v667 = vmul.f32 %v481, %v639
  %v668 = vmul.f32 %v484, %v639
  %v669 = vmul.f32 %v489, %v639
  %v670 = vmul.f32 %v492, %v639
  %v671 = vmul.f32 %v497, %v639
  %v672 = vmul.f32 %v500, %v639
  %v673 = vmul.f32 %v505, %v639
  %v674 = vmul.f32 %v508, %v639
  %v675 = vmul.f32 %v513, %v639
  %v676 = vmul.f32 %v516, %v639
  %v677 = vmul.f32 %v521, %v639
  %v678 = vmul.f32 %v524, %v639
  %v679 = vmul.f32 %v529, %v639
  %v680 = vmul.f32 %v532, %v639
  %v681 = vmul.f32 %v537, %v639
  %v682 = vmul.f32 %v540, %v639
  %v683 = vmul.f32 %v545, %v639
  %v684 = vmul.f32 %v548, %v639
  %v685 = vmul.f32 %v553, %v639
  %v686 = vmul.f32 %v556, %v639
  %v687 = vmul.f32 %v561, %v639
  %v688 = vmul.f32 %v564, %v639
  %v689 = vmul.f32 %v569, %v639
  %v690 = vmul.f32 %v572, %v639
  %v691 = vmul.f32 %v577, %v639
  %v692 = vmul.f32 %v580, %v639
  %v693 = vmul.f32 %v585, %v639
  %v694 = vmul.f32 %v588, %v639
  %v695 = vmul.f32 %v593, %v639
  %v696 = vmul.f32 %v596, %v639
  %v697 = vmul.f32 %v601, %v639
  %v698 = vmul.f32 %v604, %v639
  %v699 = vmul.f32 %v609, %v639
  %v700 = vmul.f32 %v612, %v639
  %v701 = vmul.f32 %v617, %v639
  %v702 = vmul.f32 %v620, %v639
  %v703 = vmul.f32 %v625, %v639
  %v704 = vmul.f32 %v628, %v639
  %v705 = vld [vmem:[%s3] sm:$0x1]
  %v707 = vlaneseq
  %v708 = vshrl.u32 %v707, 7
  %v709 = vsub.s32 0, %v708
  %v710 = vrot.slane %v705, %v709
  %v712 = vadd.f32 %v641, %v710
  %v713 = vadd.f32 %v642, %v710
  %v714 = vadd.f32 %v643, %v710
  %v715 = vadd.f32 %v644, %v710
  %v716 = vadd.f32 %v645, %v710
  %v717 = vadd.f32 %v646, %v710
  %v718 = vadd.f32 %v647, %v710
  %v719 = vadd.f32 %v648, %v710
  %v720 = vadd.f32 %v649, %v710
  %v721 = vadd.f32 %v650, %v710
  %v722 = vadd.f32 %v651, %v710
  %v723 = vadd.f32 %v652, %v710
  %v724 = vadd.f32 %v653, %v710
  %v725 = vadd.f32 %v654, %v710
  %v726 = vadd.f32 %v655, %v710
  %v727 = vadd.f32 %v656, %v710
  %v728 = vadd.f32 %v657, %v710
  %v729 = vadd.f32 %v658, %v710
  %v730 = vadd.f32 %v659, %v710
  %v731 = vadd.f32 %v660, %v710
  %v732 = vadd.f32 %v661, %v710
  %v733 = vadd.f32 %v662, %v710
  %v734 = vadd.f32 %v663, %v710
  %v735 = vadd.f32 %v664, %v710
  %v736 = vadd.f32 %v665, %v710
  %v737 = vadd.f32 %v666, %v710
  %v738 = vadd.f32 %v667, %v710
  %v739 = vadd.f32 %v668, %v710
  %v740 = vadd.f32 %v669, %v710
  %v741 = vadd.f32 %v670, %v710
  %v742 = vadd.f32 %v671, %v710
  %v743 = vadd.f32 %v672, %v710
  %v744 = vadd.f32 %v673, %v710
  %v745 = vadd.f32 %v674, %v710
  %v746 = vadd.f32 %v675, %v710
  %v747 = vadd.f32 %v676, %v710
  %v748 = vadd.f32 %v677, %v710
  %v749 = vadd.f32 %v678, %v710
  %v750 = vadd.f32 %v679, %v710
  %v751 = vadd.f32 %v680, %v710
  %v752 = vadd.f32 %v681, %v710
  %v753 = vadd.f32 %v682, %v710
  %v754 = vadd.f32 %v683, %v710
  %v755 = vadd.f32 %v684, %v710
  %v756 = vadd.f32 %v685, %v710
  %v757 = vadd.f32 %v686, %v710
  %v758 = vadd.f32 %v687, %v710
  %v759 = vadd.f32 %v688, %v710
  %v760 = vadd.f32 %v689, %v710
  %v761 = vadd.f32 %v690, %v710
  %v762 = vadd.f32 %v691, %v710
  %v763 = vadd.f32 %v692, %v710
  %v764 = vadd.f32 %v693, %v710
  %v765 = vadd.f32 %v694, %v710
  %v766 = vadd.f32 %v695, %v710
  %v767 = vadd.f32 %v696, %v710
  %v768 = vadd.f32 %v697, %v710
  %v769 = vadd.f32 %v698, %v710
  %v770 = vadd.f32 %v699, %v710
  %v771 = vadd.f32 %v700, %v710
  %v772 = vadd.f32 %v701, %v710
  %v773 = vadd.f32 %v702, %v710
  %v774 = vadd.f32 %v703, %v710
  %v775 = vadd.f32 %v704, %v710
  %776 = vst [vmem:[%s4] sm:$0xff] %v712
  %777 = vst [vmem:[%s4 + $0x8] sm:$0xff] %v713
  %778 = vst [vmem:[%s4 + $0x10] sm:$0xff] %v714
  %779 = vst [vmem:[%s4 + $0x18] sm:$0xff] %v715
  %780 = vst [vmem:[%s4 + $0x20] sm:$0xff] %v716
  %781 = vst [vmem:[%s4 + $0x28] sm:$0xff] %v717
  %782 = vst [vmem:[%s4 + $0x30] sm:$0xff] %v718
  %783 = vst [vmem:[%s4 + $0x38] sm:$0xff] %v719
  %784 = vst [vmem:[%s4 + $0x40] sm:$0xff] %v720
  %785 = vst [vmem:[%s4 + $0x48] sm:$0xff] %v721
  %786 = vst [vmem:[%s4 + $0x50] sm:$0xff] %v722
  %787 = vst [vmem:[%s4 + $0x58] sm:$0xff] %v723
  %788 = vst [vmem:[%s4 + $0x60] sm:$0xff] %v724
  %789 = vst [vmem:[%s4 + $0x68] sm:$0xff] %v725
  %790 = vst [vmem:[%s4 + $0x70] sm:$0xff] %v726
  %791 = vst [vmem:[%s4 + $0x78] sm:$0xff] %v727
  %792 = vst [vmem:[%s4 + $0x80] sm:$0xff] %v728
  %793 = vst [vmem:[%s4 + $0x88] sm:$0xff] %v729
  %794 = vst [vmem:[%s4 + $0x90] sm:$0xff] %v730
  %795 = vst [vmem:[%s4 + $0x98] sm:$0xff] %v731
  %796 = vst [vmem:[%s4 + $0xa0] sm:$0xff] %v732
  %797 = vst [vmem:[%s4 + $0xa8] sm:$0xff] %v733
  %798 = vst [vmem:[%s4 + $0xb0] sm:$0xff] %v734
  %799 = vst [vmem:[%s4 + $0xb8] sm:$0xff] %v735
  %800 = vst [vmem:[%s4 + $0xc0] sm:$0xff] %v736
  %801 = vst [vmem:[%s4 + $0xc8] sm:$0xff] %v737
  %802 = vst [vmem:[%s4 + $0xd0] sm:$0xff] %v738
  %803 = vst [vmem:[%s4 + $0xd8] sm:$0xff] %v739
  %804 = vst [vmem:[%s4 + $0xe0] sm:$0xff] %v740
  %805 = vst [vmem:[%s4 + $0xe8] sm:$0xff] %v741
  %806 = vst [vmem:[%s4 + $0xf0] sm:$0xff] %v742
  %807 = vst [vmem:[%s4 + $0xf8] sm:$0xff] %v743
  %808 = vst [vmem:[%s4 + $0x100] sm:$0xff] %v744
  %809 = vst [vmem:[%s4 + $0x108] sm:$0xff] %v745
  %810 = vst [vmem:[%s4 + $0x110] sm:$0xff] %v746
  %811 = vst [vmem:[%s4 + $0x118] sm:$0xff] %v747
  %812 = vst [vmem:[%s4 + $0x120] sm:$0xff] %v748
  %813 = vst [vmem:[%s4 + $0x128] sm:$0xff] %v749
  %814 = vst [vmem:[%s4 + $0x130] sm:$0xff] %v750
  %815 = vst [vmem:[%s4 + $0x138] sm:$0xff] %v751
  %816 = vst [vmem:[%s4 + $0x140] sm:$0xff] %v752
  %817 = vst [vmem:[%s4 + $0x148] sm:$0xff] %v753
  %818 = vst [vmem:[%s4 + $0x150] sm:$0xff] %v754
  %819 = vst [vmem:[%s4 + $0x158] sm:$0xff] %v755
  %820 = vst [vmem:[%s4 + $0x160] sm:$0xff] %v756
  %821 = vst [vmem:[%s4 + $0x168] sm:$0xff] %v757
  %822 = vst [vmem:[%s4 + $0x170] sm:$0xff] %v758
  %823 = vst [vmem:[%s4 + $0x178] sm:$0xff] %v759
  %824 = vst [vmem:[%s4 + $0x180] sm:$0xff] %v760
  %825 = vst [vmem:[%s4 + $0x188] sm:$0xff] %v761
  %826 = vst [vmem:[%s4 + $0x190] sm:$0xff] %v762
  %827 = vst [vmem:[%s4 + $0x198] sm:$0xff] %v763
  %828 = vst [vmem:[%s4 + $0x1a0] sm:$0xff] %v764
  %829 = vst [vmem:[%s4 + $0x1a8] sm:$0xff] %v765
  %830 = vst [vmem:[%s4 + $0x1b0] sm:$0xff] %v766
  %831 = vst [vmem:[%s4 + $0x1b8] sm:$0xff] %v767
  %832 = vst [vmem:[%s4 + $0x1c0] sm:$0xff] %v768
  %833 = vst [vmem:[%s4 + $0x1c8] sm:$0xff] %v769
  %834 = vst [vmem:[%s4 + $0x1d0] sm:$0xff] %v770
  %835 = vst [vmem:[%s4 + $0x1d8] sm:$0xff] %v771
  %836 = vst [vmem:[%s4 + $0x1e0] sm:$0xff] %v772
  %837 = vst [vmem:[%s4 + $0x1e8] sm:$0xff] %v773
  %838 = vst [vmem:[%s4 + $0x1f0] sm:$0xff] %v774
  %839 = vst [vmem:[%s4 + $0x1f8] sm:$0xff] %v775
  %v840 = vlaneseq
  %v841 = vshrl.u32 %v840, 7
  %v842 = vadd.s32 %v841, 8
  %v843 = vadd.s32 %v841, 16
  %v844 = vadd.s32 %v841, 24
  %v845 = vadd.s32 %v841, 32
  %v846 = vadd.s32 %v841, 40
  %v847 = vadd.s32 %v841, 48
  %v848 = vadd.s32 %v841, 56
  %v849 = vadd.s32 %v841, 64
  %v850 = vadd.s32 %v841, 72
  %v851 = vadd.s32 %v841, 80
  %v852 = vadd.s32 %v841, 88
  %v853 = vadd.s32 %v841, 96
  %v854 = vadd.s32 %v841, 104
  %v855 = vadd.s32 %v841, 112
  %v856 = vadd.s32 %v841, 120
  %v857 = vadd.s32 %v841, 128
  %v858 = vadd.s32 %v841, 136
  %v859 = vadd.s32 %v841, 144
  %v860 = vadd.s32 %v841, 152
  %v861 = vadd.s32 %v841, 160
  %v862 = vadd.s32 %v841, 168
  %v863 = vadd.s32 %v841, 176
  %v864 = vadd.s32 %v841, 184
  %v865 = vadd.s32 %v841, 192
  %v866 = vadd.s32 %v841, 200
  %v867 = vadd.s32 %v841, 208
  %v868 = vadd.s32 %v841, 216
  %v869 = vadd.s32 %v841, 224
  %v870 = vadd.s32 %v841, 232
  %v871 = vadd.s32 %v841, 240
  %v872 = vadd.s32 %v841, 248
  %v873 = vadd.s32 %v841, 256
  %v874 = vadd.s32 %v841, 264
  %v875 = vadd.s32 %v841, 272
  %v876 = vadd.s32 %v841, 280
  %v877 = vadd.s32 %v841, 288
  %v878 = vadd.s32 %v841, 296
  %v879 = vadd.s32 %v841, 304
  %v880 = vadd.s32 %v841, 312
  %v881 = vadd.s32 %v841, 320
  %v882 = vadd.s32 %v841, 328
  %v883 = vadd.s32 %v841, 336
  %v884 = vadd.s32 %v841, 344
  %v885 = vadd.s32 %v841, 352
  %v886 = vadd.s32 %v841, 360
  %v887 = vadd.s32 %v841, 368
  %v888 = vadd.s32 %v841, 376
  %v889 = vadd.s32 %v841, 384
  %v890 = vadd.s32 %v841, 392
  %v891 = vadd.s32 %v841, 400
  %v892 = vadd.s32 %v841, 408
  %v893 = vadd.s32 %v841, 416
  %v894 = vadd.s32 %v841, 424
  %v895 = vadd.s32 %v841, 432
  %v896 = vadd.s32 %v841, 440
  %v897 = vadd.s32 %v841, 448
  %v898 = vadd.s32 %v841, 456
  %v899 = vadd.s32 %v841, 464
  %v900 = vadd.s32 %v841, 472
  %v901 = vadd.s32 %v841, 480
  %v902 = vadd.s32 %v841, 488
  %v903 = vadd.s32 %v841, 496
  %v904 = vadd.s32 %v841, 504
  %s905 = smul.u32 0, 512
  %v906 = vstv %s905
  %v907 = vadd.s32 %v841, %v906
  %v908 = vadd.s32 %v842, %v906
  %v909 = vadd.s32 %v843, %v906
  %v910 = vadd.s32 %v844, %v906
  %v911 = vadd.s32 %v845, %v906
  %v912 = vadd.s32 %v846, %v906
  %v913 = vadd.s32 %v847, %v906
  %v914 = vadd.s32 %v848, %v906
  %v915 = vadd.s32 %v849, %v906
  %v916 = vadd.s32 %v850, %v906
  %v917 = vadd.s32 %v851, %v906
  %v918 = vadd.s32 %v852, %v906
  %v919 = vadd.s32 %v853, %v906
  %v920 = vadd.s32 %v854, %v906
  %v921 = vadd.s32 %v855, %v906
  %v922 = vadd.s32 %v856, %v906
  %v923 = vadd.s32 %v857, %v906
  %v924 = vadd.s32 %v858, %v906
  %v925 = vadd.s32 %v859, %v906
  %v926 = vadd.s32 %v860, %v906
  %v927 = vadd.s32 %v861, %v906
  %v928 = vadd.s32 %v862, %v906
  %v929 = vadd.s32 %v863, %v906
  %v930 = vadd.s32 %v864, %v906
  %v931 = vadd.s32 %v865, %v906
  %v932 = vadd.s32 %v866, %v906
  %v933 = vadd.s32 %v867, %v906
  %v934 = vadd.s32 %v868, %v906
  %v935 = vadd.s32 %v869, %v906
  %v936 = vadd.s32 %v870, %v906
  %v937 = vadd.s32 %v871, %v906
  %v938 = vadd.s32 %v872, %v906
  %v939 = vadd.s32 %v873, %v906
  %v940 = vadd.s32 %v874, %v906
  %v941 = vadd.s32 %v875, %v906
  %v942 = vadd.s32 %v876, %v906
  %v943 = vadd.s32 %v877, %v906
  %v944 = vadd.s32 %v878, %v906
  %v945 = vadd.s32 %v879, %v906
  %v946 = vadd.s32 %v880, %v906
  %v947 = vadd.s32 %v881, %v906
  %v948 = vadd.s32 %v882, %v906
  %v949 = vadd.s32 %v883, %v906
  %v950 = vadd.s32 %v884, %v906
  %v951 = vadd.s32 %v885, %v906
  %v952 = vadd.s32 %v886, %v906
  %v953 = vadd.s32 %v887, %v906
  %v954 = vadd.s32 %v888, %v906
  %v955 = vadd.s32 %v889, %v906
  %v956 = vadd.s32 %v890, %v906
  %v957 = vadd.s32 %v891, %v906
  %v958 = vadd.s32 %v892, %v906
  %v959 = vadd.s32 %v893, %v906
  %v960 = vadd.s32 %v894, %v906
  %v961 = vadd.s32 %v895, %v906
  %v962 = vadd.s32 %v896, %v906
  %v963 = vadd.s32 %v897, %v906
  %v964 = vadd.s32 %v898, %v906
  %v965 = vadd.s32 %v899, %v906
  %v966 = vadd.s32 %v900, %v906
  %v967 = vadd.s32 %v901, %v906
  %v968 = vadd.s32 %v902, %v906
  %v969 = vadd.s32 %v903, %v906
  %v970 = vadd.s32 %v904, %v906
  %vm971 = vcmp.lt.s32.totalorder %v907, 512
  %vm972 = vcmp.lt.s32.totalorder %v908, 512
  %vm973 = vcmp.lt.s32.totalorder %v909, 512
  %vm974 = vcmp.lt.s32.totalorder %v910, 512
  %vm975 = vcmp.lt.s32.totalorder %v911, 512
  %vm976 = vcmp.lt.s32.totalorder %v912, 512
  %vm977 = vcmp.lt.s32.totalorder %v913, 512
  %vm978 = vcmp.lt.s32.totalorder %v914, 512
  %vm979 = vcmp.lt.s32.totalorder %v915, 512
  %vm980 = vcmp.lt.s32.totalorder %v916, 512
  %vm981 = vcmp.lt.s32.totalorder %v917, 512
  %vm982 = vcmp.lt.s32.totalorder %v918, 512
  %vm983 = vcmp.lt.s32.totalorder %v919, 512
  %vm984 = vcmp.lt.s32.totalorder %v920, 512
  %vm985 = vcmp.lt.s32.totalorder %v921, 512
  %vm986 = vcmp.lt.s32.totalorder %v922, 512
  %vm987 = vcmp.lt.s32.totalorder %v923, 512
  %vm988 = vcmp.lt.s32.totalorder %v924, 512
  %vm989 = vcmp.lt.s32.totalorder %v925, 512
  %vm990 = vcmp.lt.s32.totalorder %v926, 512
  %vm991 = vcmp.lt.s32.totalorder %v927, 512
  %vm992 = vcmp.lt.s32.totalorder %v928, 512
  %vm993 = vcmp.lt.s32.totalorder %v929, 512
  %vm994 = vcmp.lt.s32.totalorder %v930, 512
  %vm995 = vcmp.lt.s32.totalorder %v931, 512
  %vm996 = vcmp.lt.s32.totalorder %v932, 512
  %vm997 = vcmp.lt.s32.totalorder %v933, 512
  %vm998 = vcmp.lt.s32.totalorder %v934, 512
  %vm999 = vcmp.lt.s32.totalorder %v935, 512
  %vm1000 = vcmp.lt.s32.totalorder %v936, 512
  %vm1001 = vcmp.lt.s32.totalorder %v937, 512
  %vm1002 = vcmp.lt.s32.totalorder %v938, 512
  %vm1003 = vcmp.lt.s32.totalorder %v939, 512
  %vm1004 = vcmp.lt.s32.totalorder %v940, 512
  %vm1005 = vcmp.lt.s32.totalorder %v941, 512
  %vm1006 = vcmp.lt.s32.totalorder %v942, 512
  %vm1007 = vcmp.lt.s32.totalorder %v943, 512
  %vm1008 = vcmp.lt.s32.totalorder %v944, 512
  %vm1009 = vcmp.lt.s32.totalorder %v945, 512
  %vm1010 = vcmp.lt.s32.totalorder %v946, 512
  %vm1011 = vcmp.lt.s32.totalorder %v947, 512
  %vm1012 = vcmp.lt.s32.totalorder %v948, 512
  %vm1013 = vcmp.lt.s32.totalorder %v949, 512
  %vm1014 = vcmp.lt.s32.totalorder %v950, 512
  %vm1015 = vcmp.lt.s32.totalorder %v951, 512
  %vm1016 = vcmp.lt.s32.totalorder %v952, 512
  %vm1017 = vcmp.lt.s32.totalorder %v953, 512
  %vm1018 = vcmp.lt.s32.totalorder %v954, 512
  %vm1019 = vcmp.lt.s32.totalorder %v955, 512
  %vm1020 = vcmp.lt.s32.totalorder %v956, 512
  %vm1021 = vcmp.lt.s32.totalorder %v957, 512
  %vm1022 = vcmp.lt.s32.totalorder %v958, 512
  %vm1023 = vcmp.lt.s32.totalorder %v959, 512
  %vm1024 = vcmp.lt.s32.totalorder %v960, 512
  %vm1025 = vcmp.lt.s32.totalorder %v961, 512
  %vm1026 = vcmp.lt.s32.totalorder %v962, 512
  %vm1027 = vcmp.lt.s32.totalorder %v963, 512
  %vm1028 = vcmp.lt.s32.totalorder %v964, 512
  %vm1029 = vcmp.lt.s32.totalorder %v965, 512
  %vm1030 = vcmp.lt.s32.totalorder %v966, 512
  %vm1031 = vcmp.lt.s32.totalorder %v967, 512
  %vm1032 = vcmp.lt.s32.totalorder %v968, 512
  %vm1033 = vcmp.lt.s32.totalorder %v969, 512
  %vm1034 = vcmp.lt.s32.totalorder %v970, 512
  %v1035 = vsel %vm971, %v712, inf
  %v1036 = vsel %vm972, %v713, inf
  %v1037 = vsel %vm973, %v714, inf
  %v1038 = vsel %vm974, %v715, inf
  %v1039 = vsel %vm975, %v716, inf
  %v1040 = vsel %vm976, %v717, inf
  %v1041 = vsel %vm977, %v718, inf
  %v1042 = vsel %vm978, %v719, inf
  %v1043 = vsel %vm979, %v720, inf
  %v1044 = vsel %vm980, %v721, inf
  %v1045 = vsel %vm981, %v722, inf
  %v1046 = vsel %vm982, %v723, inf
  %v1047 = vsel %vm983, %v724, inf
  %v1048 = vsel %vm984, %v725, inf
  %v1049 = vsel %vm985, %v726, inf
  %v1050 = vsel %vm986, %v727, inf
  %v1051 = vsel %vm987, %v728, inf
  %v1052 = vsel %vm988, %v729, inf
  %v1053 = vsel %vm989, %v730, inf
  %v1054 = vsel %vm990, %v731, inf
  %v1055 = vsel %vm991, %v732, inf
  %v1056 = vsel %vm992, %v733, inf
  %v1057 = vsel %vm993, %v734, inf
  %v1058 = vsel %vm994, %v735, inf
  %v1059 = vsel %vm995, %v736, inf
  %v1060 = vsel %vm996, %v737, inf
  %v1061 = vsel %vm997, %v738, inf
  %v1062 = vsel %vm998, %v739, inf
  %v1063 = vsel %vm999, %v740, inf
  %v1064 = vsel %vm1000, %v741, inf
  %v1065 = vsel %vm1001, %v742, inf
  %v1066 = vsel %vm1002, %v743, inf
  %v1067 = vsel %vm1003, %v744, inf
  %v1068 = vsel %vm1004, %v745, inf
  %v1069 = vsel %vm1005, %v746, inf
  %v1070 = vsel %vm1006, %v747, inf
  %v1071 = vsel %vm1007, %v748, inf
  %v1072 = vsel %vm1008, %v749, inf
  %v1073 = vsel %vm1009, %v750, inf
  %v1074 = vsel %vm1010, %v751, inf
  %v1075 = vsel %vm1011, %v752, inf
  %v1076 = vsel %vm1012, %v753, inf
  %v1077 = vsel %vm1013, %v754, inf
  %v1078 = vsel %vm1014, %v755, inf
  %v1079 = vsel %vm1015, %v756, inf
  %v1080 = vsel %vm1016, %v757, inf
  %v1081 = vsel %vm1017, %v758, inf
  %v1082 = vsel %vm1018, %v759, inf
  %v1083 = vsel %vm1019, %v760, inf
  %v1084 = vsel %vm1020, %v761, inf
  %v1085 = vsel %vm1021, %v762, inf
  %v1086 = vsel %vm1022, %v763, inf
  %v1087 = vsel %vm1023, %v764, inf
  %v1088 = vsel %vm1024, %v765, inf
  %v1089 = vsel %vm1025, %v766, inf
  %v1090 = vsel %vm1026, %v767, inf
  %v1091 = vsel %vm1027, %v768, inf
  %v1092 = vsel %vm1028, %v769, inf
  %v1093 = vsel %vm1029, %v770, inf
  %v1094 = vsel %vm1030, %v771, inf
  %v1095 = vsel %vm1031, %v772, inf
  %v1096 = vsel %vm1032, %v773, inf
  %v1097 = vsel %vm1033, %v774, inf
  %v1098 = vsel %vm1034, %v775, inf
  %v1099 = vmin.f32 %v1035, %v1039
  %v1100 = vmin.f32 %v1036, %v1040
  %v1101 = vmin.f32 %v1037, %v1041
  %v1102 = vmin.f32 %v1038, %v1042
  %v1103 = vmin.f32 %v1099, %v1043
  %v1104 = vmin.f32 %v1100, %v1044
  %v1105 = vmin.f32 %v1101, %v1045
  %v1106 = vmin.f32 %v1102, %v1046
  %v1107 = vmin.f32 %v1103, %v1047
  %v1108 = vmin.f32 %v1104, %v1048
  %v1109 = vmin.f32 %v1105, %v1049
  %v1110 = vmin.f32 %v1106, %v1050
  %v1111 = vmin.f32 %v1107, %v1051
  %v1112 = vmin.f32 %v1108, %v1052
  %v1113 = vmin.f32 %v1109, %v1053
  %v1114 = vmin.f32 %v1110, %v1054
  %v1115 = vmin.f32 %v1111, %v1055
  %v1116 = vmin.f32 %v1112, %v1056
  %v1117 = vmin.f32 %v1113, %v1057
  %v1118 = vmin.f32 %v1114, %v1058
  %v1119 = vmin.f32 %v1115, %v1059
  %v1120 = vmin.f32 %v1116, %v1060
  %v1121 = vmin.f32 %v1117, %v1061
  %v1122 = vmin.f32 %v1118, %v1062
  %v1123 = vmin.f32 %v1119, %v1063
  %v1124 = vmin.f32 %v1120, %v1064
  %v1125 = vmin.f32 %v1121, %v1065
  %v1126 = vmin.f32 %v1122, %v1066
  %v1127 = vmin.f32 %v1123, %v1067
  %v1128 = vmin.f32 %v1124, %v1068
  %v1129 = vmin.f32 %v1125, %v1069
  %v1130 = vmin.f32 %v1126, %v1070
  %v1131 = vmin.f32 %v1127, %v1071
  %v1132 = vmin.f32 %v1128, %v1072
  %v1133 = vmin.f32 %v1129, %v1073
  %v1134 = vmin.f32 %v1130, %v1074
  %v1135 = vmin.f32 %v1131, %v1075
  %v1136 = vmin.f32 %v1132, %v1076
  %v1137 = vmin.f32 %v1133, %v1077
  %v1138 = vmin.f32 %v1134, %v1078
  %v1139 = vmin.f32 %v1135, %v1079
  %v1140 = vmin.f32 %v1136, %v1080
  %v1141 = vmin.f32 %v1137, %v1081
  %v1142 = vmin.f32 %v1138, %v1082
  %v1143 = vmin.f32 %v1139, %v1083
  %v1144 = vmin.f32 %v1140, %v1084
  %v1145 = vmin.f32 %v1141, %v1085
  %v1146 = vmin.f32 %v1142, %v1086
  %v1147 = vmin.f32 %v1143, %v1087
  %v1148 = vmin.f32 %v1144, %v1088
  %v1149 = vmin.f32 %v1145, %v1089
  %v1150 = vmin.f32 %v1146, %v1090
  %v1151 = vmin.f32 %v1147, %v1091
  %v1152 = vmin.f32 %v1148, %v1092
  %v1153 = vmin.f32 %v1149, %v1093
  %v1154 = vmin.f32 %v1150, %v1094
  %v1155 = vmin.f32 %v1151, %v1095
  %v1156 = vmin.f32 %v1152, %v1096
  %v1157 = vmin.f32 %v1153, %v1097
  %v1158 = vmin.f32 %v1154, %v1098
  %v1159 = vmin.f32 %v1155, %v1156
  %v1160 = vmin.f32 %v1157, %v1158
  %v1161 = vmin.f32 %v1159, %v1160
  %1162 = vmin.xlane.f32.xlu0 %v1161
  %v1163 = vpop.xlane.xlu0 %1162
  %v1164 = vrot.slane %v1163, 4
  %v1165 = vmin.f32 %v1163, %v1164
  %v1166 = vrot.slane %v1165, 2
  %v1167 = vmin.f32 %v1165, %v1166
  %v1168 = vrot.slane %v1167, 1
  %v1169 = vmin.f32 %v1167, %v1168
  %s1170 = vtos %v1169
  %v1171 = vsel %vm971, %v712, -inf
  %v1172 = vsel %vm972, %v713, -inf
  %v1173 = vsel %vm973, %v714, -inf
  %v1174 = vsel %vm974, %v715, -inf
  %v1175 = vsel %vm975, %v716, -inf
  %v1176 = vsel %vm976, %v717, -inf
  %v1177 = vsel %vm977, %v718, -inf
  %v1178 = vsel %vm978, %v719, -inf
  %v1179 = vsel %vm979, %v720, -inf
  %v1180 = vsel %vm980, %v721, -inf
  %v1181 = vsel %vm981, %v722, -inf
  %v1182 = vsel %vm982, %v723, -inf
  %v1183 = vsel %vm983, %v724, -inf
  %v1184 = vsel %vm984, %v725, -inf
  %v1185 = vsel %vm985, %v726, -inf
  %v1186 = vsel %vm986, %v727, -inf
  %v1187 = vsel %vm987, %v728, -inf
  %v1188 = vsel %vm988, %v729, -inf
  %v1189 = vsel %vm989, %v730, -inf
  %v1190 = vsel %vm990, %v731, -inf
  %v1191 = vsel %vm991, %v732, -inf
  %v1192 = vsel %vm992, %v733, -inf
  %v1193 = vsel %vm993, %v734, -inf
  %v1194 = vsel %vm994, %v735, -inf
  %v1195 = vsel %vm995, %v736, -inf
  %v1196 = vsel %vm996, %v737, -inf
  %v1197 = vsel %vm997, %v738, -inf
  %v1198 = vsel %vm998, %v739, -inf
  %v1199 = vsel %vm999, %v740, -inf
  %v1200 = vsel %vm1000, %v741, -inf
  %v1201 = vsel %vm1001, %v742, -inf
  %v1202 = vsel %vm1002, %v743, -inf
  %v1203 = vsel %vm1003, %v744, -inf
  %v1204 = vsel %vm1004, %v745, -inf
  %v1205 = vsel %vm1005, %v746, -inf
  %v1206 = vsel %vm1006, %v747, -inf
  %v1207 = vsel %vm1007, %v748, -inf
  %v1208 = vsel %vm1008, %v749, -inf
  %v1209 = vsel %vm1009, %v750, -inf
  %v1210 = vsel %vm1010, %v751, -inf
  %v1211 = vsel %vm1011, %v752, -inf
  %v1212 = vsel %vm1012, %v753, -inf
  %v1213 = vsel %vm1013, %v754, -inf
  %v1214 = vsel %vm1014, %v755, -inf
  %v1215 = vsel %vm1015, %v756, -inf
  %v1216 = vsel %vm1016, %v757, -inf
  %v1217 = vsel %vm1017, %v758, -inf
  %v1218 = vsel %vm1018, %v759, -inf
  %v1219 = vsel %vm1019, %v760, -inf
  %v1220 = vsel %vm1020, %v761, -inf
  %v1221 = vsel %vm1021, %v762, -inf
  %v1222 = vsel %vm1022, %v763, -inf
  %v1223 = vsel %vm1023, %v764, -inf
  %v1224 = vsel %vm1024, %v765, -inf
  %v1225 = vsel %vm1025, %v766, -inf
  %v1226 = vsel %vm1026, %v767, -inf
  %v1227 = vsel %vm1027, %v768, -inf
  %v1228 = vsel %vm1028, %v769, -inf
  %v1229 = vsel %vm1029, %v770, -inf
  %v1230 = vsel %vm1030, %v771, -inf
  %v1231 = vsel %vm1031, %v772, -inf
  %v1232 = vsel %vm1032, %v773, -inf
  %v1233 = vsel %vm1033, %v774, -inf
  %v1234 = vsel %vm1034, %v775, -inf
  %v1235 = vmax.f32 %v1171, %v1175
  %v1236 = vmax.f32 %v1172, %v1176
  %v1237 = vmax.f32 %v1173, %v1177
  %v1238 = vmax.f32 %v1174, %v1178
  %v1239 = vmax.f32 %v1235, %v1179
  %v1240 = vmax.f32 %v1236, %v1180
  %v1241 = vmax.f32 %v1237, %v1181
  %v1242 = vmax.f32 %v1238, %v1182
  %v1243 = vmax.f32 %v1239, %v1183
  %v1244 = vmax.f32 %v1240, %v1184
  %v1245 = vmax.f32 %v1241, %v1185
  %v1246 = vmax.f32 %v1242, %v1186
  %v1247 = vmax.f32 %v1243, %v1187
  %v1248 = vmax.f32 %v1244, %v1188
  %v1249 = vmax.f32 %v1245, %v1189
  %v1250 = vmax.f32 %v1246, %v1190
  %v1251 = vmax.f32 %v1247, %v1191
  %v1252 = vmax.f32 %v1248, %v1192
  %v1253 = vmax.f32 %v1249, %v1193
  %v1254 = vmax.f32 %v1250, %v1194
  %v1255 = vmax.f32 %v1251, %v1195
  %v1256 = vmax.f32 %v1252, %v1196
  %v1257 = vmax.f32 %v1253, %v1197
  %v1258 = vmax.f32 %v1254, %v1198
  %v1259 = vmax.f32 %v1255, %v1199
  %v1260 = vmax.f32 %v1256, %v1200
  %v1261 = vmax.f32 %v1257, %v1201
  %v1262 = vmax.f32 %v1258, %v1202
  %v1263 = vmax.f32 %v1259, %v1203
  %v1264 = vmax.f32 %v1260, %v1204
  %v1265 = vmax.f32 %v1261, %v1205
  %v1266 = vmax.f32 %v1262, %v1206
  %v1267 = vmax.f32 %v1263, %v1207
  %v1268 = vmax.f32 %v1264, %v1208
  %v1269 = vmax.f32 %v1265, %v1209
  %v1270 = vmax.f32 %v1266, %v1210
  %v1271 = vmax.f32 %v1267, %v1211
  %v1272 = vmax.f32 %v1268, %v1212
  %v1273 = vmax.f32 %v1269, %v1213
  %v1274 = vmax.f32 %v1270, %v1214
  %v1275 = vmax.f32 %v1271, %v1215
  %v1276 = vmax.f32 %v1272, %v1216
  %v1277 = vmax.f32 %v1273, %v1217
  %v1278 = vmax.f32 %v1274, %v1218
  %v1279 = vmax.f32 %v1275, %v1219
  %v1280 = vmax.f32 %v1276, %v1220
  %v1281 = vmax.f32 %v1277, %v1221
  %v1282 = vmax.f32 %v1278, %v1222
  %v1283 = vmax.f32 %v1279, %v1223
  %v1284 = vmax.f32 %v1280, %v1224
  %v1285 = vmax.f32 %v1281, %v1225
  %v1286 = vmax.f32 %v1282, %v1226
  %v1287 = vmax.f32 %v1283, %v1227
  %v1288 = vmax.f32 %v1284, %v1228
  %v1289 = vmax.f32 %v1285, %v1229
  %v1290 = vmax.f32 %v1286, %v1230
  %v1291 = vmax.f32 %v1287, %v1231
  %v1292 = vmax.f32 %v1288, %v1232
  %v1293 = vmax.f32 %v1289, %v1233
  %v1294 = vmax.f32 %v1290, %v1234
  %v1295 = vmax.f32 %v1291, %v1292
  %v1296 = vmax.f32 %v1293, %v1294
  %v1297 = vmax.f32 %v1295, %v1296
  %1298 = vmax.xlane.f32.xlu0 %v1297
  %v1299 = vpop.xlane.xlu0 %1298
  %v1300 = vrot.slane %v1299, 4
  %v1301 = vmax.f32 %v1299, %v1300
  %v1302 = vrot.slane %v1301, 2
  %v1303 = vmax.f32 %v1301, %v1302
  %v1304 = vrot.slane %v1303, 1
  %v1305 = vmax.f32 %v1303, %v1304
  %s1306 = vtos %v1305
  %vm1307 = vcmp.eq.s32.totalorder %v841, 0
  %v1308 = vstv %s1170
  %v1309 = vstv %s1306
  %v1310 = vsel %vm1307, %v1308, %v1309
  %1311 = vst [vmem:[%s5] sm:$0x3] %v1310
  // Predicated region
  $region18: #{lazy_quantize_wrapper_conv2d.4} parent=0 // pred_check
    _
  $region19: #{lazy_quantize_wrapper_conv2d.4} parent=0 // pred_check_branch
    %1313 = sbr.rel (0) target = $region21
  $region20: #{lazy_quantize_wrapper_conv2d.4} parent=0 // pred_region
    _
  $region21: #{lazy_quantize_wrapper_conv2d.4} parent=0 // pred_fallthru
    _
  // Predicated region
  $region22: #{lazy_quantize_wrapper_conv2d.4} parent=0 // pred_check
    _
  $region23: #{lazy_quantize_wrapper_conv2d.4} parent=0 // pred_check_branch
    %1315 = sbr.rel (0) target = $region25
  $region24: #{lazy_quantize_wrapper_conv2d.4} parent=0 // pred_region
    _
  $region25: #{lazy_quantize_wrapper_conv2d.4} parent=0 // pred_fallthru
    _
  // Predicated region
  $region26: #{lazy_quantize_wrapper_conv2d.4} parent=0 // pred_check
    _
  $region27: #{lazy_quantize_wrapper_conv2d.4} parent=0 // pred_check_branch
    %1317 = sbr.rel (0) target = $region29
  $region28: #{lazy_quantize_wrapper_conv2d.4} parent=0 // pred_region
    _
  $region29: #{lazy_quantize_wrapper_conv2d.4} parent=0 // pred_fallthru
    _
  // Predicated region
  $region30: #{lazy_quantize_wrapper_conv2d.4} parent=0 // pred_check
    _
  $region31: #{lazy_quantize_wrapper_conv2d.4} parent=0 // pred_check_branch
    %1319 = sbr.rel (0) target = $region33
  $region32: #{lazy_quantize_wrapper_conv2d.4} parent=0 // pred_region
    _
  $region33: #{lazy_quantize_wrapper_conv2d.4} parent=0 // pred_fallthru
    _

</llo_original>
